<compile_context>
chip_gen: v7x
topology: tpu7x:2x2x1
jax: 0.10.0
libtpu: 0.0.40
codegen_flags: <defaults>
</compile_context>

<pallas_src>
import math
import functools

import jax
import jax.numpy as jnp
from jax import lax
from jax.experimental import pallas as pl
from jax.experimental.pallas import tpu as pltpu

# Channel sizes of the Decoder: 256 -> 256 -> 128 -> 64 -> 3
CHANNELS = (256, 256, 128, 64, 3)
_INV_SQRT2 = 1.0 / math.sqrt(2.0)


def _gelu_exact(x):
    # PyTorch nn.GELU() default = exact erf formulation (NOT the tanh approx).
    return 0.5 * x * (1.0 + lax.erf(x * _INV_SQRT2))


def _round_up(x, m):
    return ((x + m - 1) // m) * m


def decoder_kernel(x_ref,
                   w1_ref, b1_ref,
                   w2_ref, b2_ref,
                   w3_ref, b3_ref,
                   w4_ref, b4_ref,
                   o_ref):
    """Fused 4x (pointwise conv + GELU), channel-major with length on lanes.

    x_ref : (256, tl)       one batch element, tl positions on the lane axis
    wK_ref: (C_out, C_in)   Conv1d weights (kernel_size=1), bf16 or f32
    bK_ref: (C_out, 1)      biases, f32
    o_ref : (3, tl)
    """
    compute_dtype = w1_ref.dtype  # bf16 (default perf path) or f32

    def layer(h, w_ref, b_ref):
        # (C_out, C_in) @ (C_in, tl) -> (C_out, tl); f32 accumulation on MXU.
        y = jnp.dot(w_ref[...], h.astype(compute_dtype),
                    preferred_element_type=jnp.float32)
        return _gelu_exact(y + b_ref[...])

    h = x_ref[...]
    h = layer(h, w1_ref, b1_ref)
    h = layer(h, w2_ref, b2_ref)
    h = layer(h, w3_ref, b3_ref)
    h = layer(h, w4_ref, b4_ref)
    o_ref[...] = h.astype(o_ref.dtype)


@functools.partial(jax.jit, static_argnames=("tl", "use_bf16"))
def decoder_forward(x_ncl, params, *, tl=2048, use_bf16=True):
    """x_ncl: (N, 256, L) float32 (NCL, like PyTorch Conv1d). Returns (N, 3, L)."""
    N, C_in, L = x_ncl.shape
    assert C_in == CHANNELS[0]

    # Length tile: multiple of 128 (lane width), no bigger than the padded L.
    tl_eff = min(tl, _round_up(L, 128))
    tl_eff = max(128, _round_up(tl_eff, 128))
    L_pad = _round_up(L, tl_eff)
    if L_pad != L:
        x_ncl = jnp.pad(x_ncl, ((0, 0), (0, 0), (0, L_pad - L)))

    w_dtype = jnp.bfloat16 if use_bf16 else jnp.float32
    flat = []
    for (w, b) in params:
        flat.append(w.astype(w_dtype))                        # (C_out, C_in)
        flat.append(b.reshape(-1, 1).astype(jnp.float32))     # (C_out, 1)

    grid = (N, L_pad // tl_eff)

    # x: (batch squeezed, all channels, one length tile) -> kernel sees (256, tl)
    in_specs = [pl.BlockSpec((None, CHANNELS[0], tl_eff),
                             lambda n, l: (n, 0, l))]
    # Weights/biases are small (<0.5 MiB) and loop-invariant: whole-array VMEM.
    param_spec = pl.BlockSpec(memory_space=pltpu.MemorySpace.VMEM)
    in_specs += [param_spec] * (2 * 4)

    out_specs = pl.BlockSpec((None, CHANNELS[-1], tl_eff),
                             lambda n, l: (n, 0, l))

    flops = 2 * N * L_pad * sum(CHANNELS[i] * CHANNELS[i + 1] for i in range(4))
    transcendentals = N * L_pad * sum(CHANNELS[1:])
    bytes_accessed = (N * L_pad * (CHANNELS[0] + CHANNELS[-1]) * 4
                      + sum(int(a.size) * a.dtype.itemsize for a in flat))

    out = pl.pallas_call(
        decoder_kernel,
        out_shape=jax.ShapeDtypeStruct((N, CHANNELS[-1], L_pad), x_ncl.dtype),
        grid_spec=pltpu.PrefetchScalarGridSpec(
            num_scalar_prefetch=0,
            grid=grid,
            in_specs=in_specs,
            out_specs=out_specs,
        ),
        compiler_params=pltpu.CompilerParams(
            dimension_semantics=("parallel", "parallel"),
            vmem_limit_bytes=48 * 1024 * 1024),
        cost_estimate=pl.CostEstimate(flops=flops,
                                      transcendentals=transcendentals,
                                      bytes_accessed=bytes_accessed),
    )(x_ncl, *flat)

    if L_pad != L:
        out = out[:, :, :L]
    return out


def init_decoder_params(key):
    """Deterministic init mimicking PyTorch Conv1d default (uniform +-1/sqrt(fan_in))."""
    params = []
    for li in range(4):
        c_in, c_out = CHANNELS[li], CHANNELS[li + 1]
        key, kw, kb = jax.random.split(key, 3)
        bound = 1.0 / math.sqrt(c_in)  # kernel_size = 1 -> fan_in = c_in
        w = jax.random.uniform(kw, (c_out, c_in), jnp.float32, -bound, bound)
        b = jax.random.uniform(kb, (c_out,), jnp.float32, -bound, bound)
        params.append((w, b))
    return params


def decoder_ref(x_ncl, params):
    """Pure-JAX f32 reference (matches the PyTorch module exactly)."""
    h = jnp.transpose(x_ncl, (0, 2, 1))  # (N, L, C)
    for (w, b) in params:
        h = jnp.einsum("nlc,oc->nlo", h, w) + b
        h = 0.5 * h * (1.0 + lax.erf(h * _INV_SQRT2))
    return jnp.transpose(h, (0, 2, 1))   # (N, 3, L)


if __name__ == "__main__":
    key = jax.random.PRNGKey(0)
    key, kx = jax.random.split(key)

    N, C, L = 2, 256, 16          # in_channels fixed to 256 by the module
    x = jax.random.normal(kx, (N, C, L), jnp.float32)
    params = init_decoder_params(key)
    y_ref = decoder_ref(x, params)

    # Full-f32 path: must match the exact reference tightly.
    y_f32 = jax.block_until_ready(decoder_forward(x, params, use_bf16=False))
    assert y_f32.shape == (N, 3, L), y_f32.shape
    assert jnp.allclose(y_f32, y_ref, atol=1e-5, rtol=1e-5), float(
        jnp.max(jnp.abs(y_f32 - y_ref)))

    # Default perf path: bf16 MXU operands, f32 accumulation -> looser tolerance.
    y = jax.block_until_ready(decoder_forward(x, params))
    assert y.shape == (N, 3, L), y.shape
    assert jnp.allclose(y, y_ref, atol=5e-2, rtol=5e-2), float(
        jnp.max(jnp.abs(y - y_ref)))

    print("KERNEL_OK")
</pallas_src>

<mosaic_0001>
module attributes {stable_mosaic.version = 11 : i64} {
  func.func @decoder_kernel(%arg0: i32, %arg1: i32, %arg2: memref<1x256x128xf32, #tpu.memory_space<vmem>>, %arg3: memref<256x256xf32, #tpu.memory_space<vmem>>, %arg4: memref<256x1xf32, #tpu.memory_space<vmem>>, %arg5: memref<128x256xf32, #tpu.memory_space<vmem>>, %arg6: memref<128x1xf32, #tpu.memory_space<vmem>>, %arg7: memref<64x128xf32, #tpu.memory_space<vmem>>, %arg8: memref<64x1xf32, #tpu.memory_space<vmem>>, %arg9: memref<3x64xf32, #tpu.memory_space<vmem>>, %arg10: memref<3x1xf32, #tpu.memory_space<vmem>>, %arg11: memref<1x3x128xf32, #tpu.memory_space<vmem>>) attributes {dimension_semantics = [#tpu.dimension_semantics<parallel>, #tpu.dimension_semantics<parallel>], iteration_bounds = array<i64: 2, 1>, scalar_prefetch = 0 : i64, scratch_operands = 0 : i64, tpu.core_type = #tpu.core_type<tc>, window_params = [{transform_indices = @transform_0, window_bounds = array<i64: 1, 256, 128>}, {pipeline_mode = #tpu.pipeline_mode<synchronous>, transform_indices = @transform_1, window_bounds = array<i64: 256, 256>}, {pipeline_mode = #tpu.pipeline_mode<synchronous>, transform_indices = @transform_2, window_bounds = array<i64: 256, 1>}, {pipeline_mode = #tpu.pipeline_mode<synchronous>, transform_indices = @transform_3, window_bounds = array<i64: 128, 256>}, {pipeline_mode = #tpu.pipeline_mode<synchronous>, transform_indices = @transform_4, window_bounds = array<i64: 128, 1>}, {pipeline_mode = #tpu.pipeline_mode<synchronous>, transform_indices = @transform_5, window_bounds = array<i64: 64, 128>}, {pipeline_mode = #tpu.pipeline_mode<synchronous>, transform_indices = @transform_6, window_bounds = array<i64: 64, 1>}, {pipeline_mode = #tpu.pipeline_mode<synchronous>, transform_indices = @transform_7, window_bounds = array<i64: 3, 64>}, {pipeline_mode = #tpu.pipeline_mode<synchronous>, transform_indices = @transform_8, window_bounds = array<i64: 3, 1>}, {transform_indices = @transform_9, window_bounds = array<i64: 1, 3, 128>}]} {
    %c0 = arith.constant 0 : index
    %c0_0 = arith.constant 0 : index
    %c0_1 = arith.constant 0 : index
    %0 = vector.load %arg2[%c0, %c0_0, %c0_1] : memref<1x256x128xf32, #tpu.memory_space<vmem>>, vector<1x256x128xf32>
    %1 = vector.shape_cast %0 : vector<1x256x128xf32> to vector<256x128xf32>
    %c0_2 = arith.constant 0 : index
    %c0_3 = arith.constant 0 : index
    %2 = vector.load %arg3[%c0_2, %c0_3] : memref<256x256xf32, #tpu.memory_space<vmem>>, vector<256x256xf32>
    %cst = arith.constant dense<0.000000e+00> : vector<256x128xf32>
    %3 = tpu.matmul %2, %1, %cst {dimension_numbers = #tpu.dot_dimension_numbers<[1], [0], [0], [1], [0, 0, 1, 1], [], []>} : vector<256x256xf32>, vector<256x128xf32>, vector<256x128xf32> -> vector<256x128xf32>
    %c0_4 = arith.constant 0 : index
    %c0_5 = arith.constant 0 : index
    %4 = vector.load %arg4[%c0_4, %c0_5] : memref<256x1xf32, #tpu.memory_space<vmem>>, vector<256x1xf32>
    %5 = vector.broadcast %4 : vector<256x1xf32> to vector<256x128xf32>
    %6 = arith.addf %3, %5 : vector<256x128xf32>
    %cst_6 = arith.constant 5.000000e-01 : f32
    %7 = vector.broadcast %cst_6 : f32 to vector<256x128xf32>
    %8 = arith.mulf %7, %6 : vector<256x128xf32>
    %cst_7 = arith.constant 0.707106769 : f32
    %9 = vector.broadcast %cst_7 : f32 to vector<256x128xf32>
    %10 = arith.mulf %6, %9 : vector<256x128xf32>
    %11 = math.erf %10 : vector<256x128xf32>
    %cst_8 = arith.constant 1.000000e+00 : f32
    %12 = vector.broadcast %cst_8 : f32 to vector<256x128xf32>
    %13 = arith.addf %12, %11 : vector<256x128xf32>
    %14 = arith.mulf %8, %13 : vector<256x128xf32>
    %c0_9 = arith.constant 0 : index
    %c0_10 = arith.constant 0 : index
    %15 = vector.load %arg5[%c0_9, %c0_10] : memref<128x256xf32, #tpu.memory_space<vmem>>, vector<128x256xf32>
    %cst_11 = arith.constant dense<0.000000e+00> : vector<128x128xf32>
    %16 = tpu.matmul %15, %14, %cst_11 {dimension_numbers = #tpu.dot_dimension_numbers<[1], [0], [0], [1], [0, 0, 1, 1], [], []>} : vector<128x256xf32>, vector<256x128xf32>, vector<128x128xf32> -> vector<128x128xf32>
    %c0_12 = arith.constant 0 : index
    %c0_13 = arith.constant 0 : index
    %17 = vector.load %arg6[%c0_12, %c0_13] : memref<128x1xf32, #tpu.memory_space<vmem>>, vector<128x1xf32>
    %18 = vector.broadcast %17 : vector<128x1xf32> to vector<128x128xf32>
    %19 = arith.addf %16, %18 : vector<128x128xf32>
    %cst_14 = arith.constant 5.000000e-01 : f32
    %20 = vector.broadcast %cst_14 : f32 to vector<128x128xf32>
    %21 = arith.mulf %20, %19 : vector<128x128xf32>
    %cst_15 = arith.constant 0.707106769 : f32
    %22 = vector.broadcast %cst_15 : f32 to vector<128x128xf32>
    %23 = arith.mulf %19, %22 : vector<128x128xf32>
    %24 = math.erf %23 : vector<128x128xf32>
    %cst_16 = arith.constant 1.000000e+00 : f32
    %25 = vector.broadcast %cst_16 : f32 to vector<128x128xf32>
    %26 = arith.addf %25, %24 : vector<128x128xf32>
    %27 = arith.mulf %21, %26 : vector<128x128xf32>
    %c0_17 = arith.constant 0 : index
    %c0_18 = arith.constant 0 : index
    %28 = vector.load %arg7[%c0_17, %c0_18] : memref<64x128xf32, #tpu.memory_space<vmem>>, vector<64x128xf32>
    %cst_19 = arith.constant dense<0.000000e+00> : vector<64x128xf32>
    %29 = tpu.matmul %28, %27, %cst_19 {dimension_numbers = #tpu.dot_dimension_numbers<[1], [0], [0], [1], [0, 0, 1, 1], [], []>} : vector<64x128xf32>, vector<128x128xf32>, vector<64x128xf32> -> vector<64x128xf32>
    %c0_20 = arith.constant 0 : index
    %c0_21 = arith.constant 0 : index
    %30 = vector.load %arg8[%c0_20, %c0_21] : memref<64x1xf32, #tpu.memory_space<vmem>>, vector<64x1xf32>
    %31 = vector.broadcast %30 : vector<64x1xf32> to vector<64x128xf32>
    %32 = arith.addf %29, %31 : vector<64x128xf32>
    %cst_22 = arith.constant 5.000000e-01 : f32
    %33 = vector.broadcast %cst_22 : f32 to vector<64x128xf32>
    %34 = arith.mulf %33, %32 : vector<64x128xf32>
    %cst_23 = arith.constant 0.707106769 : f32
    %35 = vector.broadcast %cst_23 : f32 to vector<64x128xf32>
    %36 = arith.mulf %32, %35 : vector<64x128xf32>
    %37 = math.erf %36 : vector<64x128xf32>
    %cst_24 = arith.constant 1.000000e+00 : f32
    %38 = vector.broadcast %cst_24 : f32 to vector<64x128xf32>
    %39 = arith.addf %38, %37 : vector<64x128xf32>
    %40 = arith.mulf %34, %39 : vector<64x128xf32>
    %c0_25 = arith.constant 0 : index
    %c0_26 = arith.constant 0 : index
    %41 = vector.load %arg9[%c0_25, %c0_26] : memref<3x64xf32, #tpu.memory_space<vmem>>, vector<3x64xf32>
    %cst_27 = arith.constant dense<0.000000e+00> : vector<3x128xf32>
    %42 = tpu.matmul %41, %40, %cst_27 {dimension_numbers = #tpu.dot_dimension_numbers<[1], [0], [0], [1], [0, 0, 1, 1], [], []>} : vector<3x64xf32>, vector<64x128xf32>, vector<3x128xf32> -> vector<3x128xf32>
    %c0_28 = arith.constant 0 : index
    %c0_29 = arith.constant 0 : index
    %43 = vector.load %arg10[%c0_28, %c0_29] : memref<3x1xf32, #tpu.memory_space<vmem>>, vector<3x1xf32>
    %44 = vector.broadcast %43 : vector<3x1xf32> to vector<3x128xf32>
    %45 = arith.addf %42, %44 : vector<3x128xf32>
    %cst_30 = arith.constant 5.000000e-01 : f32
    %46 = vector.broadcast %cst_30 : f32 to vector<3x128xf32>
    %47 = arith.mulf %46, %45 : vector<3x128xf32>
    %cst_31 = arith.constant 0.707106769 : f32
    %48 = vector.broadcast %cst_31 : f32 to vector<3x128xf32>
    %49 = arith.mulf %45, %48 : vector<3x128xf32>
    %50 = math.erf %49 : vector<3x128xf32>
    %cst_32 = arith.constant 1.000000e+00 : f32
    %51 = vector.broadcast %cst_32 : f32 to vector<3x128xf32>
    %52 = arith.addf %51, %50 : vector<3x128xf32>
    %53 = arith.mulf %47, %52 : vector<3x128xf32>
    %c0_33 = arith.constant 0 : index
    %c0_34 = arith.constant 0 : index
    %c0_35 = arith.constant 0 : index
    %54 = vector.load %arg11[%c0_33, %c0_34, %c0_35] : memref<1x3x128xf32, #tpu.memory_space<vmem>>, vector<1x3x128xf32>
    %55 = vector.shape_cast %54 : vector<1x3x128xf32> to vector<3x128xf32>
    %56 = vector.shape_cast %53 : vector<3x128xf32> to vector<1x3x128xf32>
    tpu.vector_store %arg11[%c0_33, %c0_34, %c0_35], %56 {strides = array<i32>} : memref<1x3x128xf32, #tpu.memory_space<vmem>>, vector<1x3x128xf32>,
    return
  }
  func.func @transform_0(%arg0: i32, %arg1: i32) -> (i32, i32, i32) {
    %c0_i32 = arith.constant 0 : i32
    %c0_i32_0 = arith.constant 0 : i32
    return %arg0, %c0_i32, %arg1 : i32, i32, i32
  }
  func.func @transform_1(%arg0: i32, %arg1: i32) -> (i32, i32) {
    %c0_i32 = arith.constant 0 : i32
    %c0_i32_0 = arith.constant 0 : i32
    %c0_i32_1 = arith.constant 0 : i32
    return %c0_i32, %c0_i32_0 : i32, i32
  }
  func.func @transform_2(%arg0: i32, %arg1: i32) -> (i32, i32) {
    %c0_i32 = arith.constant 0 : i32
    %c0_i32_0 = arith.constant 0 : i32
    %c0_i32_1 = arith.constant 0 : i32
    return %c0_i32, %c0_i32_0 : i32, i32
  }
  func.func @transform_3(%arg0: i32, %arg1: i32) -> (i32, i32) {
    %c0_i32 = arith.constant 0 : i32
    %c0_i32_0 = arith.constant 0 : i32
    %c0_i32_1 = arith.constant 0 : i32
    return %c0_i32, %c0_i32_0 : i32, i32
  }
  func.func @transform_4(%arg0: i32, %arg1: i32) -> (i32, i32) {
    %c0_i32 = arith.constant 0 : i32
    %c0_i32_0 = arith.constant 0 : i32
    %c0_i32_1 = arith.constant 0 : i32
    return %c0_i32, %c0_i32_0 : i32, i32
  }
  func.func @transform_5(%arg0: i32, %arg1: i32) -> (i32, i32) {
    %c0_i32 = arith.constant 0 : i32
    %c0_i32_0 = arith.constant 0 : i32
    %c0_i32_1 = arith.constant 0 : i32
    return %c0_i32, %c0_i32_0 : i32, i32
  }
  func.func @transform_6(%arg0: i32, %arg1: i32) -> (i32, i32) {
    %c0_i32 = arith.constant 0 : i32
    %c0_i32_0 = arith.constant 0 : i32
    %c0_i32_1 = arith.constant 0 : i32
    return %c0_i32, %c0_i32_0 : i32, i32
  }
  func.func @transform_7(%arg0: i32, %arg1: i32) -> (i32, i32) {
    %c0_i32 = arith.constant 0 : i32
    %c0_i32_0 = arith.constant 0 : i32
    %c0_i32_1 = arith.constant 0 : i32
    return %c0_i32, %c0_i32_0 : i32, i32
  }
  func.func @transform_8(%arg0: i32, %arg1: i32) -> (i32, i32) {
    %c0_i32 = arith.constant 0 : i32
    %c0_i32_0 = arith.constant 0 : i32
    %c0_i32_1 = arith.constant 0 : i32
    return %c0_i32, %c0_i32_0 : i32, i32
  }
  func.func @transform_9(%arg0: i32, %arg1: i32) -> (i32, i32, i32) {
    %c0_i32 = arith.constant 0 : i32
    %c0_i32_0 = arith.constant 0 : i32
    return %arg0, %c0_i32, %arg1 : i32, i32, i32
  }
}

</mosaic_0001>

<llo_original>
// kernel: decoder_forward.1
$region0: #{decoder_forward.1}
  #allocation0 [shape = 'u32[]', space=smem, size = 0x4, offset = 0x4, fixed_abs, tag = 'smem constant byte address 0x4 - core index']
  #allocation1 [shape = 'u32[144,128]{1,0:T(1,128)}', space=vmem, size = 0x12000, scoped, tag = 'internal scratch']
  %s0 = inlined_call_operand.vmem [shape: f32[2,256,128], index: 0, kind: input, shape index: {}]
  %s1 = inlined_call_operand.vmem [shape: f32[256,256], index: 1, kind: input, shape index: {}]
  %s2 = inlined_call_operand.vmem [shape: f32[256,1], index: 2, kind: input, shape index: {}]
  %s3 = inlined_call_operand.vmem [shape: f32[128,256], index: 3, kind: input, shape index: {}]
  %s4 = inlined_call_operand.vmem [shape: f32[128,1], index: 4, kind: input, shape index: {}]
  %s5 = inlined_call_operand.vmem [shape: f32[64,128], index: 5, kind: input, shape index: {}]
  %s6 = inlined_call_operand.vmem [shape: f32[64,1], index: 6, kind: input, shape index: {}]
  %s7 = inlined_call_operand.vmem [shape: f32[3,64], index: 7, kind: input, shape index: {}]
  %s8 = inlined_call_operand.vmem [shape: f32[3,1], index: 8, kind: input, shape index: {}]
  %s9 = inlined_call_operand.vmem [shape: f32[2,3,128], index: 9, kind: output, shape index: {}]
  %s10 = sld [smem:[#allocation0]]
  $region69: #{decoder_forward.1} parent=0
    _
  %s12 = ssub.s32 1, %s10
  %s13 = scalar_select 0, %s12, %s10
  loop: start=0, step=1, limit=4
  $region2: #{decoder_forward.1} parent=0 // loop_pre_header
    _
  $region3: #{decoder_forward.1} parent=0 // loop_header
    %s15 = sphi 0, %s19
    %p16 = scmp.ge.s32.totalorder %s15, 4
    %s22 = sphi 0, %s34
    %s23 = sphi 0, %s30
    %s24 = sphi 0, %s22
    %s25 = sphi 0, %s23
    %s26 = sphi 0, %s24
    %s27 = sphi 0, %s25
    %s39 = sphi 0, %s41
    %s42 = sphi 0, %s39
    %s43 = sphi 0, %s42
    %s59 = sphi 0, %s43
    %s63 = sphi 0, %s63
    %s65 = sphi 0, %s63
    %s66 = sphi 0, %s65
    %s80 = sphi 0, %s66
    %s84 = sphi 0, %s84
    %s86 = sphi 0, %s84
    %s87 = sphi 0, %s86
    %s101 = sphi 0, %s87
    %s105 = sphi 0, %s105
    %s107 = sphi 0, %s105
    %s108 = sphi 0, %s107
    %s122 = sphi 0, %s108
    %s126 = sphi 0, %s126
    %s128 = sphi 0, %s126
    %s129 = sphi 0, %s128
    %s143 = sphi 0, %s129
    %s147 = sphi 0, %s147
    %s149 = sphi 0, %s147
    %s150 = sphi 0, %s149
    %s164 = sphi 0, %s150
    %s168 = sphi 0, %s168
    %s170 = sphi 0, %s168
    %s171 = sphi 0, %s170
    %s185 = sphi 0, %s171
    %s189 = sphi 0, %s189
    %s191 = sphi 0, %s189
    %s192 = sphi 0, %s191
    %s206 = sphi 0, %s192
    %s210 = sphi 0, %s210
    %s212 = sphi 0, %s210
    %s213 = sphi 0, %s212
    %s227 = sphi 0, %s213
    %s235 = sphi 0, %s237
    %s238 = sphi 0, %s235
    %s239 = sphi 0, %s238
    %s255 = sphi 0, %s239
  $region4: #{decoder_forward.1} parent=0 // loop_header_branch
    %18 = sbr.rel (%p16) target = $region8
  $region5: #{decoder_forward.1} parent=0 // loop_body
    %s20 = ssub.s32 %s15, 1
    %s21 = ssub.s32 %s15, 2
    %s28 = sadd.s32 1, %s23
    %p29 = scmp.ge.s32.totalorder %s28, 1
    %s30 = scalar_select %p29, 0, %s28
    %s31 = sadd.s32 1, %s22
    %s32 = scalar_select %p29, %s31, %s22
    %p33 = scmp.ge.s32.totalorder %s32, 2
    %s34 = scalar_select %p33, 0, %s32
    %s35 = ssub.s32 %s22, %s34
    %s36 = ssub.s32 %s23, %s30
    %s37 = sor.u32 %s35, %s36
    %p38 = scmp.eq.s32.totalorder %s37, 0
    %s40 = sadd.s32 %s39, 1
    %s41 = scalar_select %p38, %s39, %s40
    %p44 = pneg %p38
    %p45 = scmp.eq.s32.totalorder %s15, 1
    %p46 = por %p44, %p45
    %p47 = scmp.ne.s32.totalorder %s39, %s42
    %p48 = scmp.eq.s32.totalorder %s15, 0
    %p49 = por %p47, %p48
    %p50 = scmp.ne.s32.totalorder %s39, %s42
    %p51 = scmp.eq.s32.totalorder %s20, 1
    %p52 = por %p50, %p51
    %p53 = scmp.ne.s32.totalorder %s42, %s43
    %p54 = scmp.eq.s32.totalorder %s20, 0
    %p55 = por %p53, %p54
    %p56 = scmp.ne.s32.totalorder %s42, %s43
    %p57 = scmp.eq.s32.totalorder %s21, 1
    %p58 = por %p56, %p57
    %p60 = scmp.ne.s32.totalorder %s43, %s59
    %p61 = scmp.eq.s32.totalorder %s21, 0
    %p62 = por %p60, %p61
    %s64 = sadd.s32 %s63, 1
    %p67 = scmp.eq.s32.totalorder %s15, 1
    %p68 = scmp.ne.s32.totalorder %s63, %s65
    %p69 = scmp.eq.s32.totalorder %s15, 0
    %p70 = por %p68, %p69
    %p71 = scmp.ne.s32.totalorder %s63, %s65
    %p72 = scmp.eq.s32.totalorder %s20, 1
    %p73 = por %p71, %p72
    %p74 = scmp.ne.s32.totalorder %s65, %s66
    %p75 = scmp.eq.s32.totalorder %s20, 0
    %p76 = por %p74, %p75
    %p77 = scmp.ne.s32.totalorder %s65, %s66
    %p78 = scmp.eq.s32.totalorder %s21, 1
    %p79 = por %p77, %p78
    %p81 = scmp.ne.s32.totalorder %s66, %s80
    %p82 = scmp.eq.s32.totalorder %s21, 0
    %p83 = por %p81, %p82
    %s85 = sadd.s32 %s84, 1
    %p88 = scmp.eq.s32.totalorder %s15, 1
    %p89 = scmp.ne.s32.totalorder %s84, %s86
    %p90 = scmp.eq.s32.totalorder %s15, 0
    %p91 = por %p89, %p90
    %p92 = scmp.ne.s32.totalorder %s84, %s86
    %p93 = scmp.eq.s32.totalorder %s20, 1
    %p94 = por %p92, %p93
    %p95 = scmp.ne.s32.totalorder %s86, %s87
    %p96 = scmp.eq.s32.totalorder %s20, 0
    %p97 = por %p95, %p96
    %p98 = scmp.ne.s32.totalorder %s86, %s87
    %p99 = scmp.eq.s32.totalorder %s21, 1
    %p100 = por %p98, %p99
    %p102 = scmp.ne.s32.totalorder %s87, %s101
    %p103 = scmp.eq.s32.totalorder %s21, 0
    %p104 = por %p102, %p103
    %s106 = sadd.s32 %s105, 1
    %p109 = scmp.eq.s32.totalorder %s15, 1
    %p110 = scmp.ne.s32.totalorder %s105, %s107
    %p111 = scmp.eq.s32.totalorder %s15, 0
    %p112 = por %p110, %p111
    %p113 = scmp.ne.s32.totalorder %s105, %s107
    %p114 = scmp.eq.s32.totalorder %s20, 1
    %p115 = por %p113, %p114
    %p116 = scmp.ne.s32.totalorder %s107, %s108
    %p117 = scmp.eq.s32.totalorder %s20, 0
    %p118 = por %p116, %p117
    %p119 = scmp.ne.s32.totalorder %s107, %s108
    %p120 = scmp.eq.s32.totalorder %s21, 1
    %p121 = por %p119, %p120
    %p123 = scmp.ne.s32.totalorder %s108, %s122
    %p124 = scmp.eq.s32.totalorder %s21, 0
    %p125 = por %p123, %p124
    %s127 = sadd.s32 %s126, 1
    %p130 = scmp.eq.s32.totalorder %s15, 1
    %p131 = scmp.ne.s32.totalorder %s126, %s128
    %p132 = scmp.eq.s32.totalorder %s15, 0
    %p133 = por %p131, %p132
    %p134 = scmp.ne.s32.totalorder %s126, %s128
    %p135 = scmp.eq.s32.totalorder %s20, 1
    %p136 = por %p134, %p135
    %p137 = scmp.ne.s32.totalorder %s128, %s129
    %p138 = scmp.eq.s32.totalorder %s20, 0
    %p139 = por %p137, %p138
    %p140 = scmp.ne.s32.totalorder %s128, %s129
    %p141 = scmp.eq.s32.totalorder %s21, 1
    %p142 = por %p140, %p141
    %p144 = scmp.ne.s32.totalorder %s129, %s143
    %p145 = scmp.eq.s32.totalorder %s21, 0
    %p146 = por %p144, %p145
    %s148 = sadd.s32 %s147, 1
    %p151 = scmp.eq.s32.totalorder %s15, 1
    %p152 = scmp.ne.s32.totalorder %s147, %s149
    %p153 = scmp.eq.s32.totalorder %s15, 0
    %p154 = por %p152, %p153
    %p155 = scmp.ne.s32.totalorder %s147, %s149
    %p156 = scmp.eq.s32.totalorder %s20, 1
    %p157 = por %p155, %p156
    %p158 = scmp.ne.s32.totalorder %s149, %s150
    %p159 = scmp.eq.s32.totalorder %s20, 0
    %p160 = por %p158, %p159
    %p161 = scmp.ne.s32.totalorder %s149, %s150
    %p162 = scmp.eq.s32.totalorder %s21, 1
    %p163 = por %p161, %p162
    %p165 = scmp.ne.s32.totalorder %s150, %s164
    %p166 = scmp.eq.s32.totalorder %s21, 0
    %p167 = por %p165, %p166
    %s169 = sadd.s32 %s168, 1
    %p172 = scmp.eq.s32.totalorder %s15, 1
    %p173 = scmp.ne.s32.totalorder %s168, %s170
    %p174 = scmp.eq.s32.totalorder %s15, 0
    %p175 = por %p173, %p174
    %p176 = scmp.ne.s32.totalorder %s168, %s170
    %p177 = scmp.eq.s32.totalorder %s20, 1
    %p178 = por %p176, %p177
    %p179 = scmp.ne.s32.totalorder %s170, %s171
    %p180 = scmp.eq.s32.totalorder %s20, 0
    %p181 = por %p179, %p180
    %p182 = scmp.ne.s32.totalorder %s170, %s171
    %p183 = scmp.eq.s32.totalorder %s21, 1
    %p184 = por %p182, %p183
    %p186 = scmp.ne.s32.totalorder %s171, %s185
    %p187 = scmp.eq.s32.totalorder %s21, 0
    %p188 = por %p186, %p187
    %s190 = sadd.s32 %s189, 1
    %p193 = scmp.eq.s32.totalorder %s15, 1
    %p194 = scmp.ne.s32.totalorder %s189, %s191
    %p195 = scmp.eq.s32.totalorder %s15, 0
    %p196 = por %p194, %p195
    %p197 = scmp.ne.s32.totalorder %s189, %s191
    %p198 = scmp.eq.s32.totalorder %s20, 1
    %p199 = por %p197, %p198
    %p200 = scmp.ne.s32.totalorder %s191, %s192
    %p201 = scmp.eq.s32.totalorder %s20, 0
    %p202 = por %p200, %p201
    %p203 = scmp.ne.s32.totalorder %s191, %s192
    %p204 = scmp.eq.s32.totalorder %s21, 1
    %p205 = por %p203, %p204
    %p207 = scmp.ne.s32.totalorder %s192, %s206
    %p208 = scmp.eq.s32.totalorder %s21, 0
    %p209 = por %p207, %p208
    %s211 = sadd.s32 %s210, 1
    %p214 = scmp.eq.s32.totalorder %s15, 1
    %p215 = scmp.ne.s32.totalorder %s210, %s212
    %p216 = scmp.eq.s32.totalorder %s15, 0
    %p217 = por %p215, %p216
    %p218 = scmp.ne.s32.totalorder %s210, %s212
    %p219 = scmp.eq.s32.totalorder %s20, 1
    %p220 = por %p218, %p219
    %p221 = scmp.ne.s32.totalorder %s212, %s213
    %p222 = scmp.eq.s32.totalorder %s20, 0
    %p223 = por %p221, %p222
    %p224 = scmp.ne.s32.totalorder %s212, %s213
    %p225 = scmp.eq.s32.totalorder %s21, 1
    %p226 = por %p224, %p225
    %p228 = scmp.ne.s32.totalorder %s213, %s227
    %p229 = scmp.eq.s32.totalorder %s21, 0
    %p230 = por %p228, %p229
    %s231 = ssub.s32 %s22, %s34
    %s232 = ssub.s32 %s23, %s30
    %s233 = sor.u32 %s231, %s232
    %p234 = scmp.eq.s32.totalorder %s233, 0
    %s236 = sadd.s32 %s235, 1
    %s237 = scalar_select %p234, %s235, %s236
    %p240 = pneg %p234
    %p241 = scmp.eq.s32.totalorder %s15, 1
    %p242 = por %p240, %p241
    %p243 = scmp.ne.s32.totalorder %s235, %s238
    %p244 = scmp.eq.s32.totalorder %s15, 0
    %p245 = por %p243, %p244
    %p246 = scmp.ne.s32.totalorder %s235, %s238
    %p247 = scmp.eq.s32.totalorder %s20, 1
    %p248 = por %p246, %p247
    %p249 = scmp.ne.s32.totalorder %s238, %s239
    %p250 = scmp.eq.s32.totalorder %s20, 0
    %p251 = por %p249, %p250
    %p252 = scmp.ne.s32.totalorder %s238, %s239
    %p253 = scmp.eq.s32.totalorder %s21, 1
    %p254 = por %p252, %p253
    %p256 = scmp.ne.s32.totalorder %s239, %s255
    %p257 = scmp.eq.s32.totalorder %s21, 0
    %p258 = por %p256, %p257
    %p259 = scmp.le.s32.totalorder 1, %s15
    %p260 = scmp.lt.s32.totalorder %s15, 3
    %p261 = pnand %p259, %p260
    %p262 = pneg %p261
    // Predicated region
    $region9: #{decoder_forward.1} parent=5 // pred_check
      _
    $region10: #{decoder_forward.1} parent=5 // pred_check_branch
      %264 = sbr.rel (%p261) target = $region12
    $region11: #{decoder_forward.1} parent=5 // pred_region
      %s265 = ssub.s32 %s15, 1
      // Predicated region
      $region13: #{decoder_forward.1} parent=11 // pred_check
        %p266 = pneg %p76
      $region14: #{decoder_forward.1} parent=11 // pred_check_branch
        %268 = sbr.rel (%p266) target = $region16
      $region15: #{decoder_forward.1} parent=11 // pred_region
        _
      $region16: #{decoder_forward.1} parent=11 // pred_fallthru
        _
      // Predicated region
      $region17: #{decoder_forward.1} parent=11 // pred_check
        %p269 = pneg %p97
      $region18: #{decoder_forward.1} parent=11 // pred_check_branch
        %271 = sbr.rel (%p269) target = $region20
      $region19: #{decoder_forward.1} parent=11 // pred_region
        _
      $region20: #{decoder_forward.1} parent=11 // pred_fallthru
        _
      // Predicated region
      $region21: #{decoder_forward.1} parent=11 // pred_check
        %p272 = pneg %p118
      $region22: #{decoder_forward.1} parent=11 // pred_check_branch
        %274 = sbr.rel (%p272) target = $region24
      $region23: #{decoder_forward.1} parent=11 // pred_region
        _
      $region24: #{decoder_forward.1} parent=11 // pred_fallthru
        _
      // Predicated region
      $region25: #{decoder_forward.1} parent=11 // pred_check
        %p275 = pneg %p139
      $region26: #{decoder_forward.1} parent=11 // pred_check_branch
        %277 = sbr.rel (%p275) target = $region28
      $region27: #{decoder_forward.1} parent=11 // pred_region
        _
      $region28: #{decoder_forward.1} parent=11 // pred_fallthru
        _
      // Predicated region
      $region29: #{decoder_forward.1} parent=11 // pred_check
        %p278 = pneg %p160
      $region30: #{decoder_forward.1} parent=11 // pred_check_branch
        %280 = sbr.rel (%p278) target = $region32
      $region31: #{decoder_forward.1} parent=11 // pred_region
        _
      $region32: #{decoder_forward.1} parent=11 // pred_fallthru
        _
      // Predicated region
      $region33: #{decoder_forward.1} parent=11 // pred_check
        %p281 = pneg %p181
      $region34: #{decoder_forward.1} parent=11 // pred_check_branch
        %283 = sbr.rel (%p281) target = $region36
      $region35: #{decoder_forward.1} parent=11 // pred_region
        _
      $region36: #{decoder_forward.1} parent=11 // pred_fallthru
        _
      // Predicated region
      $region37: #{decoder_forward.1} parent=11 // pred_check
        %p284 = pneg %p202
      $region38: #{decoder_forward.1} parent=11 // pred_check_branch
        %286 = sbr.rel (%p284) target = $region40
      $region39: #{decoder_forward.1} parent=11 // pred_region
        _
      $region40: #{decoder_forward.1} parent=11 // pred_fallthru
        _
      // Predicated region
      $region41: #{decoder_forward.1} parent=11 // pred_check
        %p287 = pneg %p223
      $region42: #{decoder_forward.1} parent=11 // pred_check_branch
        %289 = sbr.rel (%p287) target = $region44
      $region43: #{decoder_forward.1} parent=11 // pred_region
        _
      $region44: #{decoder_forward.1} parent=11 // pred_fallthru
        _
    $region12: #{decoder_forward.1} parent=5 // pred_fallthru
      _
    %p290 = scmp.lt.s32.totalorder %s15, 2
    // Predicated region
    $region45: #{decoder_forward.1} parent=5 // pred_check
      %p291 = pneg %p290
    $region46: #{decoder_forward.1} parent=5 // pred_check_branch
      %293 = sbr.rel (%p291) target = $region48
    $region47: #{decoder_forward.1} parent=5 // pred_region
      // Predicated region
      $region49: #{decoder_forward.1} parent=47 // pred_check
        %p294 = pneg %p49
      $region50: #{decoder_forward.1} parent=47 // pred_check_branch
        %296 = sbr.rel (%p294) target = $region52
      $region51: #{decoder_forward.1} parent=47 // pred_region
        %p297 = scmp.lt.s32.totalorder %s22, 1
        %s298 = scalar_select %p297, %s22, 1
        %p299 = scmp.lt.s32.totalorder %s23, 0
        %s300 = scalar_select %p299, %s23, 0
        %s301 = smul.addr %s298, 32
        %s302 = sadd.s32 %s300, %s301
        %s303 = smul.addr %s302, 8
        %s304 = scalar_lea.vmem %s0, %s303
      $region52: #{decoder_forward.1} parent=47 // pred_fallthru
        _
    $region48: #{decoder_forward.1} parent=5 // pred_fallthru
      _
    %p305 = scmp.le.s32.totalorder 1, %s15
    %p306 = scmp.lt.s32.totalorder %s15, 3
    %p307 = pnand %p305, %p306
    %p308 = pneg %p307
    // Predicated region
    $region53: #{decoder_forward.1} parent=5 // pred_check
      _
    $region54: #{decoder_forward.1} parent=5 // pred_check_branch
      %310 = sbr.rel (%p307) target = $region56
    $region55: #{decoder_forward.1} parent=5 // pred_region
      %s311 = ssub.s32 %s15, 1
      %p312 = scmp.lt.s32.totalorder %s24, 1
      %s313 = scalar_select %p312, %s24, 1
      %p314 = scmp.lt.s32.totalorder %s25, 0
      %s315 = scalar_select %p314, %s25, 0
      %s316 = smul.addr %s313, 32
      %s317 = sadd.s32 %s315, %s316
      %s318 = smul.addr %s317, 8
      %s319 = scalar_lea.vmem %s0, %s318
      %p320 = pneg %p55
      %p321 = pneg %p52
      %p322 = pneg %p76
      %p323 = pneg %p73
      %p324 = pneg %p97
      %p325 = pneg %p94
      %p326 = pneg %p118
      %p327 = pneg %p115
      %p328 = pneg %p139
      %p329 = pneg %p136
      %p330 = pneg %p160
      %p331 = pneg %p157
      %p332 = pneg %p181
      %p333 = pneg %p178
      %p334 = pneg %p202
      %p335 = pneg %p199
      %p336 = pneg %p223
      %p337 = pneg %p220
      %p338 = pneg %p251
      %p339 = pneg %p248
      %p340 = scmp.lt.s32.totalorder %s24, 1
      %s341 = scalar_select %p340, %s24, 1
      %p342 = scmp.lt.s32.totalorder %s25, 0
      %s343 = scalar_select %p342, %s25, 0
      %s344 = sadd.s32 %s343, %s341
      %s345 = smul.addr %s344, 4
      %s346 = scalar_lea.vmem %s9, %s345
      %p347 = scmp.lt.s32.totalorder %s24, 1
      %s348 = scalar_select %p347, %s24, 1
      %p349 = scmp.lt.s32.totalorder %s25, 0
      %s350 = scalar_select %p349, %s25, 0
      %s351 = smul.addr %s348, 32
      %s352 = sadd.s32 %s350, %s351
      %s353 = smul.addr %s352, 8
      %s354 = scalar_lea.vmem %s0, %s353
      %p355 = scmp.lt.s32.totalorder %s24, 1
      %s356 = scalar_select %p355, %s24, 1
      %p357 = scmp.lt.s32.totalorder %s25, 0
      %s358 = scalar_select %p357, %s25, 0
      %s359 = sadd.s32 %s358, %s356
      %s360 = smul.addr %s359, 4
      %s361 = scalar_lea.vmem %s9, %s360
      %v362 = vld [vmem:[%s354] sm:$0xff]
      %v363 = vld [vmem:[%s354 + $0x8] sm:$0xff]
      %v364 = vld [vmem:[%s354 + $0x10] sm:$0xff]
      %v365 = vld [vmem:[%s354 + $0x18] sm:$0xff]
      %v366 = vld [vmem:[%s354 + $0x20] sm:$0xff]
      %v367 = vld [vmem:[%s354 + $0x28] sm:$0xff]
      %v368 = vld [vmem:[%s354 + $0x30] sm:$0xff]
      %v369 = vld [vmem:[%s354 + $0x38] sm:$0xff]
      %v370 = vld [vmem:[%s354 + $0x40] sm:$0xff]
      %v371 = vld [vmem:[%s354 + $0x48] sm:$0xff]
      %v372 = vld [vmem:[%s354 + $0x50] sm:$0xff]
      %v373 = vld [vmem:[%s354 + $0x58] sm:$0xff]
      %v374 = vld [vmem:[%s354 + $0x60] sm:$0xff]
      %v375 = vld [vmem:[%s354 + $0x68] sm:$0xff]
      %v376 = vld [vmem:[%s354 + $0x70] sm:$0xff]
      %v377 = vld [vmem:[%s354 + $0x78] sm:$0xff]
      %v378 = vld [vmem:[%s354 + $0x80] sm:$0xff]
      %v379 = vld [vmem:[%s354 + $0x88] sm:$0xff]
      %v380 = vld [vmem:[%s354 + $0x90] sm:$0xff]
      %v381 = vld [vmem:[%s354 + $0x98] sm:$0xff]
      %v382 = vld [vmem:[%s354 + $0xa0] sm:$0xff]
      %v383 = vld [vmem:[%s354 + $0xa8] sm:$0xff]
      %v384 = vld [vmem:[%s354 + $0xb0] sm:$0xff]
      %v385 = vld [vmem:[%s354 + $0xb8] sm:$0xff]
      %v386 = vld [vmem:[%s354 + $0xc0] sm:$0xff]
      %v387 = vld [vmem:[%s354 + $0xc8] sm:$0xff]
      %v388 = vld [vmem:[%s354 + $0xd0] sm:$0xff]
      %v389 = vld [vmem:[%s354 + $0xd8] sm:$0xff]
      %v390 = vld [vmem:[%s354 + $0xe0] sm:$0xff]
      %v391 = vld [vmem:[%s354 + $0xe8] sm:$0xff]
      %v392 = vld [vmem:[%s354 + $0xf0] sm:$0xff]
      %v393 = vld [vmem:[%s354 + $0xf8] sm:$0xff]
      %v394 = vld [vmem:[%s1] sm:$0xff]
      %v395 = vld [vmem:[%s1 + $0x8] sm:$0xff]
      %v396 = vld [vmem:[%s1 + $0x10] sm:$0xff]
      %v397 = vld [vmem:[%s1 + $0x18] sm:$0xff]
      %v398 = vld [vmem:[%s1 + $0x20] sm:$0xff]
      %v399 = vld [vmem:[%s1 + $0x28] sm:$0xff]
      %v400 = vld [vmem:[%s1 + $0x30] sm:$0xff]
      %v401 = vld [vmem:[%s1 + $0x38] sm:$0xff]
      %v402 = vld [vmem:[%s1 + $0x40] sm:$0xff]
      %v403 = vld [vmem:[%s1 + $0x48] sm:$0xff]
      %v404 = vld [vmem:[%s1 + $0x50] sm:$0xff]
      %v405 = vld [vmem:[%s1 + $0x58] sm:$0xff]
      %v406 = vld [vmem:[%s1 + $0x60] sm:$0xff]
      %v407 = vld [vmem:[%s1 + $0x68] sm:$0xff]
      %v408 = vld [vmem:[%s1 + $0x70] sm:$0xff]
      %v409 = vld [vmem:[%s1 + $0x78] sm:$0xff]
      %v410 = vld [vmem:[%s1 + $0x80] sm:$0xff]
      %v411 = vld [vmem:[%s1 + $0x88] sm:$0xff]
      %v412 = vld [vmem:[%s1 + $0x90] sm:$0xff]
      %v413 = vld [vmem:[%s1 + $0x98] sm:$0xff]
      %v414 = vld [vmem:[%s1 + $0xa0] sm:$0xff]
      %v415 = vld [vmem:[%s1 + $0xa8] sm:$0xff]
      %v416 = vld [vmem:[%s1 + $0xb0] sm:$0xff]
      %v417 = vld [vmem:[%s1 + $0xb8] sm:$0xff]
      %v418 = vld [vmem:[%s1 + $0xc0] sm:$0xff]
      %v419 = vld [vmem:[%s1 + $0xc8] sm:$0xff]
      %v420 = vld [vmem:[%s1 + $0xd0] sm:$0xff]
      %v421 = vld [vmem:[%s1 + $0xd8] sm:$0xff]
      %v422 = vld [vmem:[%s1 + $0xe0] sm:$0xff]
      %v423 = vld [vmem:[%s1 + $0xe8] sm:$0xff]
      %v424 = vld [vmem:[%s1 + $0xf0] sm:$0xff]
      %v425 = vld [vmem:[%s1 + $0xf8] sm:$0xff]
      %v426 = vld [vmem:[%s1 + $0x100] sm:$0xff]
      %v427 = vld [vmem:[%s1 + $0x108] sm:$0xff]
      %v428 = vld [vmem:[%s1 + $0x110] sm:$0xff]
      %v429 = vld [vmem:[%s1 + $0x118] sm:$0xff]
      %v430 = vld [vmem:[%s1 + $0x120] sm:$0xff]
      %v431 = vld [vmem:[%s1 + $0x128] sm:$0xff]
      %v432 = vld [vmem:[%s1 + $0x130] sm:$0xff]
      %v433 = vld [vmem:[%s1 + $0x138] sm:$0xff]
      %v434 = vld [vmem:[%s1 + $0x140] sm:$0xff]
      %v435 = vld [vmem:[%s1 + $0x148] sm:$0xff]
      %v436 = vld [vmem:[%s1 + $0x150] sm:$0xff]
      %v437 = vld [vmem:[%s1 + $0x158] sm:$0xff]
      %v438 = vld [vmem:[%s1 + $0x160] sm:$0xff]
      %v439 = vld [vmem:[%s1 + $0x168] sm:$0xff]
      %v440 = vld [vmem:[%s1 + $0x170] sm:$0xff]
      %v441 = vld [vmem:[%s1 + $0x178] sm:$0xff]
      %v442 = vld [vmem:[%s1 + $0x180] sm:$0xff]
      %v443 = vld [vmem:[%s1 + $0x188] sm:$0xff]
      %v444 = vld [vmem:[%s1 + $0x190] sm:$0xff]
      %v445 = vld [vmem:[%s1 + $0x198] sm:$0xff]
      %v446 = vld [vmem:[%s1 + $0x1a0] sm:$0xff]
      %v447 = vld [vmem:[%s1 + $0x1a8] sm:$0xff]
      %v448 = vld [vmem:[%s1 + $0x1b0] sm:$0xff]
      %v449 = vld [vmem:[%s1 + $0x1b8] sm:$0xff]
      %v450 = vld [vmem:[%s1 + $0x1c0] sm:$0xff]
      %v451 = vld [vmem:[%s1 + $0x1c8] sm:$0xff]
      %v452 = vld [vmem:[%s1 + $0x1d0] sm:$0xff]
      %v453 = vld [vmem:[%s1 + $0x1d8] sm:$0xff]
      %v454 = vld [vmem:[%s1 + $0x1e0] sm:$0xff]
      %v455 = vld [vmem:[%s1 + $0x1e8] sm:$0xff]
      %v456 = vld [vmem:[%s1 + $0x1f0] sm:$0xff]
      %v457 = vld [vmem:[%s1 + $0x1f8] sm:$0xff]
      %v458 = vld [vmem:[%s2] sm:$0xff]
      %v459 = vld [vmem:[%s2 + $0x8] sm:$0xff]
      %v460 = vld [vmem:[%s2 + $0x10] sm:$0xff]
      %v461 = vld [vmem:[%s2 + $0x18] sm:$0xff]
      %v462 = vld [vmem:[%s2 + $0x20] sm:$0xff]
      %v463 = vld [vmem:[%s2 + $0x28] sm:$0xff]
      %v464 = vld [vmem:[%s2 + $0x30] sm:$0xff]
      %v465 = vld [vmem:[%s2 + $0x38] sm:$0xff]
      %v466 = vld [vmem:[%s2 + $0x40] sm:$0xff]
      %v467 = vld [vmem:[%s2 + $0x48] sm:$0xff]
      %v468 = vld [vmem:[%s2 + $0x50] sm:$0xff]
      %v469 = vld [vmem:[%s2 + $0x58] sm:$0xff]
      %v470 = vld [vmem:[%s2 + $0x60] sm:$0xff]
      %v471 = vld [vmem:[%s2 + $0x68] sm:$0xff]
      %v472 = vld [vmem:[%s2 + $0x70] sm:$0xff]
      %v473 = vld [vmem:[%s2 + $0x78] sm:$0xff]
      %v474 = vld [vmem:[%s2 + $0x80] sm:$0xff]
      %v475 = vld [vmem:[%s2 + $0x88] sm:$0xff]
      %v476 = vld [vmem:[%s2 + $0x90] sm:$0xff]
      %v477 = vld [vmem:[%s2 + $0x98] sm:$0xff]
      %v478 = vld [vmem:[%s2 + $0xa0] sm:$0xff]
      %v479 = vld [vmem:[%s2 + $0xa8] sm:$0xff]
      %v480 = vld [vmem:[%s2 + $0xb0] sm:$0xff]
      %v481 = vld [vmem:[%s2 + $0xb8] sm:$0xff]
      %v482 = vld [vmem:[%s2 + $0xc0] sm:$0xff]
      %v483 = vld [vmem:[%s2 + $0xc8] sm:$0xff]
      %v484 = vld [vmem:[%s2 + $0xd0] sm:$0xff]
      %v485 = vld [vmem:[%s2 + $0xd8] sm:$0xff]
      %v486 = vld [vmem:[%s2 + $0xe0] sm:$0xff]
      %v487 = vld [vmem:[%s2 + $0xe8] sm:$0xff]
      %v488 = vld [vmem:[%s2 + $0xf0] sm:$0xff]
      %v489 = vld [vmem:[%s2 + $0xf8] sm:$0xff]
      %491 = vset.pattern.permute.xlu0 0
      %492 = vperm.xlu0 %491, %v458
      %v493 = vpop.permute.xlu0 %492
      %496 = vset.pattern.permute.xlu0 0
      %497 = vperm.xlu0 %496, %v459
      %v498 = vpop.permute.xlu0 %497
      %501 = vset.pattern.permute.xlu0 0
      %502 = vperm.xlu0 %501, %v460
      %v503 = vpop.permute.xlu0 %502
      %506 = vset.pattern.permute.xlu0 0
      %507 = vperm.xlu0 %506, %v461
      %v508 = vpop.permute.xlu0 %507
      %511 = vset.pattern.permute.xlu0 0
      %512 = vperm.xlu0 %511, %v462
      %v513 = vpop.permute.xlu0 %512
      %516 = vset.pattern.permute.xlu0 0
      %517 = vperm.xlu0 %516, %v463
      %v518 = vpop.permute.xlu0 %517
      %521 = vset.pattern.permute.xlu0 0
      %522 = vperm.xlu0 %521, %v464
      %v523 = vpop.permute.xlu0 %522
      %526 = vset.pattern.permute.xlu0 0
      %527 = vperm.xlu0 %526, %v465
      %v528 = vpop.permute.xlu0 %527
      %531 = vset.pattern.permute.xlu0 0
      %532 = vperm.xlu0 %531, %v466
      %v533 = vpop.permute.xlu0 %532
      %536 = vset.pattern.permute.xlu0 0
      %537 = vperm.xlu0 %536, %v467
      %v538 = vpop.permute.xlu0 %537
      %541 = vset.pattern.permute.xlu0 0
      %542 = vperm.xlu0 %541, %v468
      %v543 = vpop.permute.xlu0 %542
      %546 = vset.pattern.permute.xlu0 0
      %547 = vperm.xlu0 %546, %v469
      %v548 = vpop.permute.xlu0 %547
      %551 = vset.pattern.permute.xlu0 0
      %552 = vperm.xlu0 %551, %v470
      %v553 = vpop.permute.xlu0 %552
      %556 = vset.pattern.permute.xlu0 0
      %557 = vperm.xlu0 %556, %v471
      %v558 = vpop.permute.xlu0 %557
      %561 = vset.pattern.permute.xlu0 0
      %562 = vperm.xlu0 %561, %v472
      %v563 = vpop.permute.xlu0 %562
      %566 = vset.pattern.permute.xlu0 0
      %567 = vperm.xlu0 %566, %v473
      %v568 = vpop.permute.xlu0 %567
      %571 = vset.pattern.permute.xlu0 0
      %572 = vperm.xlu0 %571, %v474
      %v573 = vpop.permute.xlu0 %572
      %576 = vset.pattern.permute.xlu0 0
      %577 = vperm.xlu0 %576, %v475
      %v578 = vpop.permute.xlu0 %577
      %581 = vset.pattern.permute.xlu0 0
      %582 = vperm.xlu0 %581, %v476
      %v583 = vpop.permute.xlu0 %582
      %586 = vset.pattern.permute.xlu0 0
      %587 = vperm.xlu0 %586, %v477
      %v588 = vpop.permute.xlu0 %587
      %591 = vset.pattern.permute.xlu0 0
      %592 = vperm.xlu0 %591, %v478
      %v593 = vpop.permute.xlu0 %592
      %596 = vset.pattern.permute.xlu0 0
      %597 = vperm.xlu0 %596, %v479
      %v598 = vpop.permute.xlu0 %597
      %601 = vset.pattern.permute.xlu0 0
      %602 = vperm.xlu0 %601, %v480
      %v603 = vpop.permute.xlu0 %602
      %606 = vset.pattern.permute.xlu0 0
      %607 = vperm.xlu0 %606, %v481
      %v608 = vpop.permute.xlu0 %607
      %611 = vset.pattern.permute.xlu0 0
      %612 = vperm.xlu0 %611, %v482
      %v613 = vpop.permute.xlu0 %612
      %616 = vset.pattern.permute.xlu0 0
      %617 = vperm.xlu0 %616, %v483
      %v618 = vpop.permute.xlu0 %617
      %621 = vset.pattern.permute.xlu0 0
      %622 = vperm.xlu0 %621, %v484
      %v623 = vpop.permute.xlu0 %622
      %626 = vset.pattern.permute.xlu0 0
      %627 = vperm.xlu0 %626, %v485
      %v628 = vpop.permute.xlu0 %627
      %631 = vset.pattern.permute.xlu0 0
      %632 = vperm.xlu0 %631, %v486
      %v633 = vpop.permute.xlu0 %632
      %636 = vset.pattern.permute.xlu0 0
      %637 = vperm.xlu0 %636, %v487
      %v638 = vpop.permute.xlu0 %637
      %641 = vset.pattern.permute.xlu0 0
      %642 = vperm.xlu0 %641, %v488
      %v643 = vpop.permute.xlu0 %642
      %646 = vset.pattern.permute.xlu0 0
      %647 = vperm.xlu0 %646, %v489
      %v648 = vpop.permute.xlu0 %647
      %650 = vmatprep.subr.mxu0 0.0
      %651 = vmatpush1.msra.mxu0 %v362
      %652 = vmatprep.subr.mxu0 0.0
      %653 = vmatpush1.msra.mxu0 %v363
      %654 = vmatprep.subr.mxu0 0.0
      %655 = vmatpush1.msra.mxu0 %v364
      %656 = vmatprep.subr.mxu0 0.0
      %657 = vmatpush1.msra.mxu0 %v365
      %658 = vmatprep.subr.mxu0 0.0
      %659 = vmatpush1.msra.mxu0 %v366
      %660 = vmatprep.subr.mxu0 0.0
      %661 = vmatpush1.msra.mxu0 %v367
      %662 = vmatprep.subr.mxu0 0.0
      %663 = vmatpush1.msra.mxu0 %v368
      %664 = vmatprep.subr.mxu0 0.0
      %665 = vmatpush1.msra.mxu0 %v369
      %666 = vmatprep.subr.mxu0 0.0
      %667 = vmatpush1.msra.mxu0 %v370
      %668 = vmatprep.subr.mxu0 0.0
      %669 = vmatpush1.msra.mxu0 %v371
      %670 = vmatprep.subr.mxu0 0.0
      %671 = vmatpush1.msra.mxu0 %v372
      %672 = vmatprep.subr.mxu0 0.0
      %673 = vmatpush1.msra.mxu0 %v373
      %674 = vmatprep.subr.mxu0 0.0
      %675 = vmatpush1.msra.mxu0 %v374
      %676 = vmatprep.subr.mxu0 0.0
      %677 = vmatpush1.msra.mxu0 %v375
      %678 = vmatprep.subr.mxu0 0.0
      %679 = vmatpush1.msra.mxu0 %v376
      %680 = vmatprep.subr.mxu0 0.0
      %681 = vmatpush1.msra.mxu0 %v377
      %682 = vmatprep.subr.mxu0 0.0
      %683 = vmatpush1.msra.mxu0 %v378
      %684 = vmatprep.subr.mxu0 0.0
      %685 = vmatpush1.msra.mxu0 %v379
      %686 = vmatprep.subr.mxu0 0.0
      %687 = vmatpush1.msra.mxu0 %v380
      %688 = vmatprep.subr.mxu0 0.0
      %689 = vmatpush1.msra.mxu0 %v381
      %690 = vmatprep.subr.mxu0 0.0
      %691 = vmatpush1.msra.mxu0 %v382
      %692 = vmatprep.subr.mxu0 0.0
      %693 = vmatpush1.msra.mxu0 %v383
      %694 = vmatprep.subr.mxu0 0.0
      %695 = vmatpush1.msra.mxu0 %v384
      %696 = vmatprep.subr.mxu0 0.0
      %697 = vmatpush1.msra.mxu0 %v385
      %698 = vmatprep.subr.mxu0 0.0
      %699 = vmatpush1.msra.mxu0 %v386
      %700 = vmatprep.subr.mxu0 0.0
      %701 = vmatpush1.msra.mxu0 %v387
      %702 = vmatprep.subr.mxu0 0.0
      %703 = vmatpush1.msra.mxu0 %v388
      %704 = vmatprep.subr.mxu0 0.0
      %705 = vmatpush1.msra.mxu0 %v389
      %706 = vmatprep.subr.mxu0 0.0
      %707 = vmatpush1.msra.mxu0 %v390
      %708 = vmatprep.subr.mxu0 0.0
      %709 = vmatpush1.msra.mxu0 %v391
      %710 = vmatprep.subr.mxu0 0.0
      %711 = vmatpush1.msra.mxu0 %v392
      %712 = vmatprep.subr.mxu0 0.0
      %713 = vmatpush1.msra.mxu0 %v393
      %714 = vmatprep.mubr.f32.mxu0 %v395
      %715 = vmatmul.mubr.f32.gmra.mrb[0].mxu0 %v394
      %v716 = vpop.f32.mrb[0].mxu0
      %v717 = vadd.f32 %v493, %v716
      %v718 = vpop.f32.mrb[0].mxu0
      %719 = vmatprep.mubr.f32.mxu0 %v397
      %720 = vmatmul.mubr.f32.gmra.mrb[0].mxu0 %v396
      %v721 = vpop.f32.mrb[0].mxu0
      %v722 = vadd.f32 %v498, %v721
      %v723 = vpop.f32.mrb[0].mxu0
      %724 = vmatprep.mubr.f32.mxu0 %v399
      %725 = vmatmul.mubr.f32.gmra.mrb[0].mxu0 %v398
      %v726 = vpop.f32.mrb[0].mxu0
      %v727 = vadd.f32 %v503, %v726
      %v728 = vpop.f32.mrb[0].mxu0
      %729 = vmatprep.mubr.f32.mxu0 %v401
      %730 = vmatmul.mubr.f32.gmra.mrb[0].mxu0 %v400
      %v731 = vpop.f32.mrb[0].mxu0
      %v732 = vadd.f32 %v508, %v731
      %v733 = vpop.f32.mrb[0].mxu0
      %734 = vmatprep.mubr.f32.mxu0 %v403
      %735 = vmatmul.mubr.f32.gmra.mrb[0].mxu0 %v402
      %v736 = vpop.f32.mrb[0].mxu0
      %v737 = vadd.f32 %v513, %v736
      %v738 = vpop.f32.mrb[0].mxu0
      %739 = vmatprep.mubr.f32.mxu0 %v405
      %740 = vmatmul.mubr.f32.gmra.mrb[0].mxu0 %v404
      %v741 = vpop.f32.mrb[0].mxu0
      %v742 = vadd.f32 %v518, %v741
      %v743 = vpop.f32.mrb[0].mxu0
      %744 = vmatprep.mubr.f32.mxu0 %v407
      %745 = vmatmul.mubr.f32.gmra.mrb[0].mxu0 %v406
      %v746 = vpop.f32.mrb[0].mxu0
      %v747 = vadd.f32 %v523, %v746
      %v748 = vpop.f32.mrb[0].mxu0
      %749 = vmatprep.mubr.f32.mxu0 %v409
      %750 = vmatmul.mubr.f32.gmra.mrb[0].mxu0 %v408
      %v751 = vpop.f32.mrb[0].mxu0
      %v752 = vadd.f32 %v528, %v751
      %v753 = vpop.f32.mrb[0].mxu0
      %754 = vmatprep.mubr.f32.mxu0 %v411
      %755 = vmatmul.mubr.f32.gmra.mrb[0].mxu0 %v410
      %v756 = vpop.f32.mrb[0].mxu0
      %v757 = vadd.f32 %v533, %v756
      %v758 = vpop.f32.mrb[0].mxu0
      %759 = vmatprep.mubr.f32.mxu0 %v413
      %760 = vmatmul.mubr.f32.gmra.mrb[0].mxu0 %v412
      %v761 = vpop.f32.mrb[0].mxu0
      %v762 = vadd.f32 %v538, %v761
      %v763 = vpop.f32.mrb[0].mxu0
      %764 = vmatprep.mubr.f32.mxu0 %v415
      %765 = vmatmul.mubr.f32.gmra.mrb[0].mxu0 %v414
      %v766 = vpop.f32.mrb[0].mxu0
      %v767 = vadd.f32 %v543, %v766
      %v768 = vpop.f32.mrb[0].mxu0
      %769 = vmatprep.mubr.f32.mxu0 %v417
      %770 = vmatmul.mubr.f32.gmra.mrb[0].mxu0 %v416
      %v771 = vpop.f32.mrb[0].mxu0
      %v772 = vadd.f32 %v548, %v771
      %v773 = vpop.f32.mrb[0].mxu0
      %774 = vmatprep.mubr.f32.mxu0 %v419
      %775 = vmatmul.mubr.f32.gmra.mrb[0].mxu0 %v418
      %v776 = vpop.f32.mrb[0].mxu0
      %v777 = vadd.f32 %v553, %v776
      %v778 = vpop.f32.mrb[0].mxu0
      %779 = vmatprep.mubr.f32.mxu0 %v421
      %780 = vmatmul.mubr.f32.gmra.mrb[0].mxu0 %v420
      %v781 = vpop.f32.mrb[0].mxu0
      %v782 = vadd.f32 %v558, %v781
      %v783 = vpop.f32.mrb[0].mxu0
      %784 = vmatprep.mubr.f32.mxu0 %v423
      %785 = vmatmul.mubr.f32.gmra.mrb[0].mxu0 %v422
      %v786 = vpop.f32.mrb[0].mxu0
      %v787 = vadd.f32 %v563, %v786
      %v788 = vpop.f32.mrb[0].mxu0
      %789 = vmatprep.mubr.f32.mxu0 %v425
      %790 = vmatmul.mubr.f32.gmra.mrb[0].mxu0 %v424
      %v791 = vpop.f32.mrb[0].mxu0
      %v792 = vadd.f32 %v568, %v791
      %v793 = vpop.f32.mrb[0].mxu0
      %794 = vmatprep.mubr.f32.mxu0 %v427
      %795 = vmatmul.mubr.f32.gmra.mrb[0].mxu0 %v426
      %v796 = vpop.f32.mrb[0].mxu0
      %v797 = vadd.f32 %v573, %v796
      %v798 = vpop.f32.mrb[0].mxu0
      %799 = vmatprep.mubr.f32.mxu0 %v429
      %800 = vmatmul.mubr.f32.gmra.mrb[0].mxu0 %v428
      %v801 = vpop.f32.mrb[0].mxu0
      %v802 = vadd.f32 %v578, %v801
      %v803 = vpop.f32.mrb[0].mxu0
      %804 = vmatprep.mubr.f32.mxu0 %v431
      %805 = vmatmul.mubr.f32.gmra.mrb[0].mxu0 %v430
      %v806 = vpop.f32.mrb[0].mxu0
      %v807 = vadd.f32 %v583, %v806
      %v808 = vpop.f32.mrb[0].mxu0
      %809 = vmatprep.mubr.f32.mxu0 %v433
      %810 = vmatmul.mubr.f32.gmra.mrb[0].mxu0 %v432
      %v811 = vpop.f32.mrb[0].mxu0
      %v812 = vadd.f32 %v588, %v811
      %v813 = vpop.f32.mrb[0].mxu0
      %814 = vmatprep.mubr.f32.mxu0 %v435
      %815 = vmatmul.mubr.f32.gmra.mrb[0].mxu0 %v434
      %v816 = vpop.f32.mrb[0].mxu0
      %v817 = vadd.f32 %v593, %v816
      %v818 = vpop.f32.mrb[0].mxu0
      %819 = vmatprep.mubr.f32.mxu0 %v437
      %820 = vmatmul.mubr.f32.gmra.mrb[0].mxu0 %v436
      %v821 = vpop.f32.mrb[0].mxu0
      %v822 = vadd.f32 %v598, %v821
      %v823 = vpop.f32.mrb[0].mxu0
      %824 = vmatprep.mubr.f32.mxu0 %v439
      %825 = vmatmul.mubr.f32.gmra.mrb[0].mxu0 %v438
      %v826 = vpop.f32.mrb[0].mxu0
      %v827 = vadd.f32 %v603, %v826
      %v828 = vpop.f32.mrb[0].mxu0
      %829 = vmatprep.mubr.f32.mxu0 %v441
      %830 = vmatmul.mubr.f32.gmra.mrb[0].mxu0 %v440
      %v831 = vpop.f32.mrb[0].mxu0
      %v832 = vadd.f32 %v608, %v831
      %v833 = vpop.f32.mrb[0].mxu0
      %834 = vmatprep.mubr.f32.mxu0 %v443
      %835 = vmatmul.mubr.f32.gmra.mrb[0].mxu0 %v442
      %v836 = vpop.f32.mrb[0].mxu0
      %v837 = vadd.f32 %v613, %v836
      %v838 = vpop.f32.mrb[0].mxu0
      %839 = vmatprep.mubr.f32.mxu0 %v445
      %840 = vmatmul.mubr.f32.gmra.mrb[0].mxu0 %v444
      %v841 = vpop.f32.mrb[0].mxu0
      %v842 = vadd.f32 %v618, %v841
      %v843 = vpop.f32.mrb[0].mxu0
      %844 = vmatprep.mubr.f32.mxu0 %v447
      %845 = vmatmul.mubr.f32.gmra.mrb[0].mxu0 %v446
      %v846 = vpop.f32.mrb[0].mxu0
      %v847 = vadd.f32 %v623, %v846
      %v848 = vpop.f32.mrb[0].mxu0
      %849 = vmatprep.mubr.f32.mxu0 %v449
      %850 = vmatmul.mubr.f32.gmra.mrb[0].mxu0 %v448
      %v851 = vpop.f32.mrb[0].mxu0
      %v852 = vadd.f32 %v628, %v851
      %v853 = vpop.f32.mrb[0].mxu0
      %854 = vmatprep.mubr.f32.mxu0 %v451
      %855 = vmatmul.mubr.f32.gmra.mrb[0].mxu0 %v450
      %v856 = vpop.f32.mrb[0].mxu0
      %v857 = vadd.f32 %v633, %v856
      %v858 = vpop.f32.mrb[0].mxu0
      %859 = vmatprep.mubr.f32.mxu0 %v453
      %860 = vmatmul.mubr.f32.gmra.mrb[0].mxu0 %v452
      %v861 = vpop.f32.mrb[0].mxu0
      %v862 = vadd.f32 %v638, %v861
      %v863 = vpop.f32.mrb[0].mxu0
      %864 = vmatprep.mubr.f32.mxu0 %v455
      %865 = vmatmul.mubr.f32.gmra.mrb[0].mxu0 %v454
      %v866 = vpop.f32.mrb[0].mxu0
      %v867 = vadd.f32 %v643, %v866
      %v868 = vpop.f32.mrb[0].mxu0
      %869 = vmatprep.mubr.f32.mxu0 %v457
      %870 = vmatmul.mubr.f32.gmra.mrb[0].mxu0 %v456
      %v871 = vpop.f32.mrb[0].mxu0
      %v872 = vadd.f32 %v648, %v871
      %v873 = vpop.f32.mrb[0].mxu0
      %874 = vdwg.mxu0
      %v875 = vmul.f32 %v717, 0.5
      %v876 = vmul.f32 %v722, 0.5
      %v877 = vmul.f32 %v727, 0.5
      %v878 = vmul.f32 %v732, 0.5
      %v879 = vmul.f32 %v737, 0.5
      %v880 = vmul.f32 %v742, 0.5
      %v881 = vmul.f32 %v747, 0.5
      %v882 = vmul.f32 %v752, 0.5
      %v883 = vmul.f32 %v757, 0.5
      %v884 = vmul.f32 %v762, 0.5
      %v885 = vmul.f32 %v767, 0.5
      %v886 = vmul.f32 %v772, 0.5
      %v887 = vmul.f32 %v777, 0.5
      %v888 = vmul.f32 %v782, 0.5
      %v889 = vmul.f32 %v787, 0.5
      %v890 = vmul.f32 %v792, 0.5
      %v891 = vmul.f32 %v797, 0.5
      %v892 = vmul.f32 %v802, 0.5
      %v893 = vmul.f32 %v807, 0.5
      %v894 = vmul.f32 %v812, 0.5
      %v895 = vmul.f32 %v817, 0.5
      %v896 = vmul.f32 %v822, 0.5
      %v897 = vmul.f32 %v827, 0.5
      %v898 = vmul.f32 %v832, 0.5
      %v899 = vmul.f32 %v837, 0.5
      %v900 = vmul.f32 %v842, 0.5
      %v901 = vmul.f32 %v847, 0.5
      %v902 = vmul.f32 %v852, 0.5
      %v903 = vmul.f32 %v857, 0.5
      %v904 = vmul.f32 %v862, 0.5
      %v905 = vmul.f32 %v867, 0.5
      %v906 = vmul.f32 %v872, 0.5
      %v907 = vmul.f32 %v717, 0.70710677
      %v908 = vmul.f32 %v722, 0.70710677
      %v909 = vmul.f32 %v727, 0.70710677
      %v910 = vmul.f32 %v732, 0.70710677
      %v911 = vmul.f32 %v737, 0.70710677
      %v912 = vmul.f32 %v742, 0.70710677
      %v913 = vmul.f32 %v747, 0.70710677
      %v914 = vmul.f32 %v752, 0.70710677
      %v915 = vmul.f32 %v757, 0.70710677
      %v916 = vmul.f32 %v762, 0.70710677
      %v917 = vmul.f32 %v767, 0.70710677
      %v918 = vmul.f32 %v772, 0.70710677
      %v919 = vmul.f32 %v777, 0.70710677
      %v920 = vmul.f32 %v782, 0.70710677
      %v921 = vmul.f32 %v787, 0.70710677
      %v922 = vmul.f32 %v792, 0.70710677
      %v923 = vmul.f32 %v797, 0.70710677
      %v924 = vmul.f32 %v802, 0.70710677
      %v925 = vmul.f32 %v807, 0.70710677
      %v926 = vmul.f32 %v812, 0.70710677
      %v927 = vmul.f32 %v817, 0.70710677
      %v928 = vmul.f32 %v822, 0.70710677
      %v929 = vmul.f32 %v827, 0.70710677
      %v930 = vmul.f32 %v832, 0.70710677
      %v931 = vmul.f32 %v837, 0.70710677
      %v932 = vmul.f32 %v842, 0.70710677
      %v933 = vmul.f32 %v847, 0.70710677
      %v934 = vmul.f32 %v852, 0.70710677
      %v935 = vmul.f32 %v857, 0.70710677
      %v936 = vmul.f32 %v862, 0.70710677
      %v937 = vmul.f32 %v867, 0.70710677
      %v938 = vmul.f32 %v872, 0.70710677
      %v939 = verf.f32.pop %v907
      %v940 = verf.f32.pop %v908
      %v941 = verf.f32.pop %v909
      %v942 = verf.f32.pop %v910
      %v943 = verf.f32.pop %v911
      %v944 = verf.f32.pop %v912
      %v945 = verf.f32.pop %v913
      %v946 = verf.f32.pop %v914
      %v947 = verf.f32.pop %v915
      %v948 = verf.f32.pop %v916
      %v949 = verf.f32.pop %v917
      %v950 = verf.f32.pop %v918
      %v951 = verf.f32.pop %v919
      %v952 = verf.f32.pop %v920
      %v953 = verf.f32.pop %v921
      %v954 = verf.f32.pop %v922
      %v955 = verf.f32.pop %v923
      %v956 = verf.f32.pop %v924
      %v957 = verf.f32.pop %v925
      %v958 = verf.f32.pop %v926
      %v959 = verf.f32.pop %v927
      %v960 = verf.f32.pop %v928
      %v961 = verf.f32.pop %v929
      %v962 = verf.f32.pop %v930
      %v963 = verf.f32.pop %v931
      %v964 = verf.f32.pop %v932
      %v965 = verf.f32.pop %v933
      %v966 = verf.f32.pop %v934
      %v967 = verf.f32.pop %v935
      %v968 = verf.f32.pop %v936
      %v969 = verf.f32.pop %v937
      %v970 = verf.f32.pop %v938
      %v971 = vadd.f32 %v939, 1.0
      %v972 = vadd.f32 %v940, 1.0
      %v973 = vadd.f32 %v941, 1.0
      %v974 = vadd.f32 %v942, 1.0
      %v975 = vadd.f32 %v943, 1.0
      %v976 = vadd.f32 %v944, 1.0
      %v977 = vadd.f32 %v945, 1.0
      %v978 = vadd.f32 %v946, 1.0
      %v979 = vadd.f32 %v947, 1.0
      %v980 = vadd.f32 %v948, 1.0
      %v981 = vadd.f32 %v949, 1.0
      %v982 = vadd.f32 %v950, 1.0
      %v983 = vadd.f32 %v951, 1.0
      %v984 = vadd.f32 %v952, 1.0
      %v985 = vadd.f32 %v953, 1.0
      %v986 = vadd.f32 %v954, 1.0
      %v987 = vadd.f32 %v955, 1.0
      %v988 = vadd.f32 %v956, 1.0
      %v989 = vadd.f32 %v957, 1.0
      %v990 = vadd.f32 %v958, 1.0
      %v991 = vadd.f32 %v959, 1.0
      %v992 = vadd.f32 %v960, 1.0
      %v993 = vadd.f32 %v961, 1.0
      %v994 = vadd.f32 %v962, 1.0
      %v995 = vadd.f32 %v963, 1.0
      %v996 = vadd.f32 %v964, 1.0
      %v997 = vadd.f32 %v965, 1.0
      %v998 = vadd.f32 %v966, 1.0
      %v999 = vadd.f32 %v967, 1.0
      %v1000 = vadd.f32 %v968, 1.0
      %v1001 = vadd.f32 %v969, 1.0
      %v1002 = vadd.f32 %v970, 1.0
      %v1003 = vmul.f32 %v875, %v971
      %v1004 = vmul.f32 %v876, %v972
      %v1005 = vmul.f32 %v877, %v973
      %v1006 = vmul.f32 %v878, %v974
      %v1007 = vmul.f32 %v879, %v975
      %v1008 = vmul.f32 %v880, %v976
      %v1009 = vmul.f32 %v881, %v977
      %v1010 = vmul.f32 %v882, %v978
      %v1011 = vmul.f32 %v883, %v979
      %v1012 = vmul.f32 %v884, %v980
      %v1013 = vmul.f32 %v885, %v981
      %v1014 = vmul.f32 %v886, %v982
      %v1015 = vmul.f32 %v887, %v983
      %v1016 = vmul.f32 %v888, %v984
      %v1017 = vmul.f32 %v889, %v985
      %v1018 = vmul.f32 %v890, %v986
      %v1019 = vmul.f32 %v891, %v987
      %v1020 = vmul.f32 %v892, %v988
      %v1021 = vmul.f32 %v893, %v989
      %v1022 = vmul.f32 %v894, %v990
      %v1023 = vmul.f32 %v895, %v991
      %v1024 = vmul.f32 %v896, %v992
      %v1025 = vmul.f32 %v897, %v993
      %v1026 = vmul.f32 %v898, %v994
      %v1027 = vmul.f32 %v899, %v995
      %v1028 = vmul.f32 %v900, %v996
      %v1029 = vmul.f32 %v901, %v997
      %v1030 = vmul.f32 %v902, %v998
      %v1031 = vmul.f32 %v903, %v999
      %v1032 = vmul.f32 %v904, %v1000
      %v1033 = vmul.f32 %v905, %v1001
      %v1034 = vmul.f32 %v906, %v1002
      %v1035 = vld [vmem:[%s3] sm:$0xff]
      %v1036 = vld [vmem:[%s3 + $0x8] sm:$0xff]
      %v1037 = vld [vmem:[%s3 + $0x10] sm:$0xff]
      %v1038 = vld [vmem:[%s3 + $0x18] sm:$0xff]
      %v1039 = vld [vmem:[%s3 + $0x20] sm:$0xff]
      %v1040 = vld [vmem:[%s3 + $0x28] sm:$0xff]
      %v1041 = vld [vmem:[%s3 + $0x30] sm:$0xff]
      %v1042 = vld [vmem:[%s3 + $0x38] sm:$0xff]
      %v1043 = vld [vmem:[%s3 + $0x40] sm:$0xff]
      %v1044 = vld [vmem:[%s3 + $0x48] sm:$0xff]
      %v1045 = vld [vmem:[%s3 + $0x50] sm:$0xff]
      %v1046 = vld [vmem:[%s3 + $0x58] sm:$0xff]
      %v1047 = vld [vmem:[%s3 + $0x60] sm:$0xff]
      %v1048 = vld [vmem:[%s3 + $0x68] sm:$0xff]
      %v1049 = vld [vmem:[%s3 + $0x70] sm:$0xff]
      %v1050 = vld [vmem:[%s3 + $0x78] sm:$0xff]
      %v1051 = vld [vmem:[%s3 + $0x80] sm:$0xff]
      %v1052 = vld [vmem:[%s3 + $0x88] sm:$0xff]
      %v1053 = vld [vmem:[%s3 + $0x90] sm:$0xff]
      %v1054 = vld [vmem:[%s3 + $0x98] sm:$0xff]
      %v1055 = vld [vmem:[%s3 + $0xa0] sm:$0xff]
      %v1056 = vld [vmem:[%s3 + $0xa8] sm:$0xff]
      %v1057 = vld [vmem:[%s3 + $0xb0] sm:$0xff]
      %v1058 = vld [vmem:[%s3 + $0xb8] sm:$0xff]
      %v1059 = vld [vmem:[%s3 + $0xc0] sm:$0xff]
      %v1060 = vld [vmem:[%s3 + $0xc8] sm:$0xff]
      %v1061 = vld [vmem:[%s3 + $0xd0] sm:$0xff]
      %v1062 = vld [vmem:[%s3 + $0xd8] sm:$0xff]
      %v1063 = vld [vmem:[%s3 + $0xe0] sm:$0xff]
      %v1064 = vld [vmem:[%s3 + $0xe8] sm:$0xff]
      %v1065 = vld [vmem:[%s3 + $0xf0] sm:$0xff]
      %v1066 = vld [vmem:[%s3 + $0xf8] sm:$0xff]
      %v1067 = vld [vmem:[%s4] sm:$0xff]
      %v1068 = vld [vmem:[%s4 + $0x8] sm:$0xff]
      %v1069 = vld [vmem:[%s4 + $0x10] sm:$0xff]
      %v1070 = vld [vmem:[%s4 + $0x18] sm:$0xff]
      %v1071 = vld [vmem:[%s4 + $0x20] sm:$0xff]
      %v1072 = vld [vmem:[%s4 + $0x28] sm:$0xff]
      %v1073 = vld [vmem:[%s4 + $0x30] sm:$0xff]
      %v1074 = vld [vmem:[%s4 + $0x38] sm:$0xff]
      %v1075 = vld [vmem:[%s4 + $0x40] sm:$0xff]
      %v1076 = vld [vmem:[%s4 + $0x48] sm:$0xff]
      %v1077 = vld [vmem:[%s4 + $0x50] sm:$0xff]
      %v1078 = vld [vmem:[%s4 + $0x58] sm:$0xff]
      %v1079 = vld [vmem:[%s4 + $0x60] sm:$0xff]
      %v1080 = vld [vmem:[%s4 + $0x68] sm:$0xff]
      %v1081 = vld [vmem:[%s4 + $0x70] sm:$0xff]
      %v1082 = vld [vmem:[%s4 + $0x78] sm:$0xff]
      %1084 = vset.pattern.permute.xlu0 0
      %1085 = vperm.xlu0 %1084, %v1067
      %v1086 = vpop.permute.xlu0 %1085
      %1089 = vset.pattern.permute.xlu0 0
      %1090 = vperm.xlu0 %1089, %v1068
      %v1091 = vpop.permute.xlu0 %1090
      %1094 = vset.pattern.permute.xlu0 0
      %1095 = vperm.xlu0 %1094, %v1069
      %v1096 = vpop.permute.xlu0 %1095
      %1099 = vset.pattern.permute.xlu0 0
      %1100 = vperm.xlu0 %1099, %v1070
      %v1101 = vpop.permute.xlu0 %1100
      %1104 = vset.pattern.permute.xlu0 0
      %1105 = vperm.xlu0 %1104, %v1071
      %v1106 = vpop.permute.xlu0 %1105
      %1109 = vset.pattern.permute.xlu0 0
      %1110 = vperm.xlu0 %1109, %v1072
      %v1111 = vpop.permute.xlu0 %1110
      %1114 = vset.pattern.permute.xlu0 0
      %1115 = vperm.xlu0 %1114, %v1073
      %v1116 = vpop.permute.xlu0 %1115
      %1119 = vset.pattern.permute.xlu0 0
      %1120 = vperm.xlu0 %1119, %v1074
      %v1121 = vpop.permute.xlu0 %1120
      %1124 = vset.pattern.permute.xlu0 0
      %1125 = vperm.xlu0 %1124, %v1075
      %v1126 = vpop.permute.xlu0 %1125
      %1129 = vset.pattern.permute.xlu0 0
      %1130 = vperm.xlu0 %1129, %v1076
      %v1131 = vpop.permute.xlu0 %1130
      %1134 = vset.pattern.permute.xlu0 0
      %1135 = vperm.xlu0 %1134, %v1077
      %v1136 = vpop.permute.xlu0 %1135
      %1139 = vset.pattern.permute.xlu0 0
      %1140 = vperm.xlu0 %1139, %v1078
      %v1141 = vpop.permute.xlu0 %1140
      %1144 = vset.pattern.permute.xlu0 0
      %1145 = vperm.xlu0 %1144, %v1079
      %v1146 = vpop.permute.xlu0 %1145
      %1149 = vset.pattern.permute.xlu0 0
      %1150 = vperm.xlu0 %1149, %v1080
      %v1151 = vpop.permute.xlu0 %1150
      %1154 = vset.pattern.permute.xlu0 0
      %1155 = vperm.xlu0 %1154, %v1081
      %v1156 = vpop.permute.xlu0 %1155
      %1159 = vset.pattern.permute.xlu0 0
      %1160 = vperm.xlu0 %1159, %v1082
      %v1161 = vpop.permute.xlu0 %1160
      %1163 = vmatprep.subr.mxu0 0.0
      %1164 = vmatpush1.msra.mxu0 %v1003
      %1165 = vmatprep.subr.mxu0 0.0
      %1166 = vmatpush1.msra.mxu0 %v1004
      %1167 = vmatprep.subr.mxu0 0.0
      %1168 = vmatpush1.msra.mxu0 %v1005
      %1169 = vmatprep.subr.mxu0 0.0
      %1170 = vmatpush1.msra.mxu0 %v1006
      %1171 = vmatprep.subr.mxu0 0.0
      %1172 = vmatpush1.msra.mxu0 %v1007
      %1173 = vmatprep.subr.mxu0 0.0
      %1174 = vmatpush1.msra.mxu0 %v1008
      %1175 = vmatprep.subr.mxu0 0.0
      %1176 = vmatpush1.msra.mxu0 %v1009
      %1177 = vmatprep.subr.mxu0 0.0
      %1178 = vmatpush1.msra.mxu0 %v1010
      %1179 = vmatprep.subr.mxu0 0.0
      %1180 = vmatpush1.msra.mxu0 %v1011
      %1181 = vmatprep.subr.mxu0 0.0
      %1182 = vmatpush1.msra.mxu0 %v1012
      %1183 = vmatprep.subr.mxu0 0.0
      %1184 = vmatpush1.msra.mxu0 %v1013
      %1185 = vmatprep.subr.mxu0 0.0
      %1186 = vmatpush1.msra.mxu0 %v1014
      %1187 = vmatprep.subr.mxu0 0.0
      %1188 = vmatpush1.msra.mxu0 %v1015
      %1189 = vmatprep.subr.mxu0 0.0
      %1190 = vmatpush1.msra.mxu0 %v1016
      %1191 = vmatprep.subr.mxu0 0.0
      %1192 = vmatpush1.msra.mxu0 %v1017
      %1193 = vmatprep.subr.mxu0 0.0
      %1194 = vmatpush1.msra.mxu0 %v1018
      %1195 = vmatprep.subr.mxu0 0.0
      %1196 = vmatpush1.msra.mxu0 %v1019
      %1197 = vmatprep.subr.mxu0 0.0
      %1198 = vmatpush1.msra.mxu0 %v1020
      %1199 = vmatprep.subr.mxu0 0.0
      %1200 = vmatpush1.msra.mxu0 %v1021
      %1201 = vmatprep.subr.mxu0 0.0
      %1202 = vmatpush1.msra.mxu0 %v1022
      %1203 = vmatprep.subr.mxu0 0.0
      %1204 = vmatpush1.msra.mxu0 %v1023
      %1205 = vmatprep.subr.mxu0 0.0
      %1206 = vmatpush1.msra.mxu0 %v1024
      %1207 = vmatprep.subr.mxu0 0.0
      %1208 = vmatpush1.msra.mxu0 %v1025
      %1209 = vmatprep.subr.mxu0 0.0
      %1210 = vmatpush1.msra.mxu0 %v1026
      %1211 = vmatprep.subr.mxu0 0.0
      %1212 = vmatpush1.msra.mxu0 %v1027
      %1213 = vmatprep.subr.mxu0 0.0
      %1214 = vmatpush1.msra.mxu0 %v1028
      %1215 = vmatprep.subr.mxu0 0.0
      %1216 = vmatpush1.msra.mxu0 %v1029
      %1217 = vmatprep.subr.mxu0 0.0
      %1218 = vmatpush1.msra.mxu0 %v1030
      %1219 = vmatprep.subr.mxu0 0.0
      %1220 = vmatpush1.msra.mxu0 %v1031
      %1221 = vmatprep.subr.mxu0 0.0
      %1222 = vmatpush1.msra.mxu0 %v1032
      %1223 = vmatprep.subr.mxu0 0.0
      %1224 = vmatpush1.msra.mxu0 %v1033
      %1225 = vmatprep.subr.mxu0 0.0
      %1226 = vmatpush1.msra.mxu0 %v1034
      %1227 = vmatprep.mubr.f32.mxu0 %v1036
      %1228 = vmatmul.mubr.f32.gmra.mrb[0].mxu0 %v1035
      %v1229 = vpop.f32.mrb[0].mxu0
      %v1230 = vadd.f32 %v1086, %v1229
      %v1231 = vpop.f32.mrb[0].mxu0
      %1232 = vmatprep.mubr.f32.mxu0 %v1038
      %1233 = vmatmul.mubr.f32.gmra.mrb[0].mxu0 %v1037
      %v1234 = vpop.f32.mrb[0].mxu0
      %v1235 = vadd.f32 %v1091, %v1234
      %v1236 = vpop.f32.mrb[0].mxu0
      %1237 = vmatprep.mubr.f32.mxu0 %v1040
      %1238 = vmatmul.mubr.f32.gmra.mrb[0].mxu0 %v1039
      %v1239 = vpop.f32.mrb[0].mxu0
      %v1240 = vadd.f32 %v1096, %v1239
      %v1241 = vpop.f32.mrb[0].mxu0
      %1242 = vmatprep.mubr.f32.mxu0 %v1042
      %1243 = vmatmul.mubr.f32.gmra.mrb[0].mxu0 %v1041
      %v1244 = vpop.f32.mrb[0].mxu0
      %v1245 = vadd.f32 %v1101, %v1244
      %v1246 = vpop.f32.mrb[0].mxu0
      %1247 = vmatprep.mubr.f32.mxu0 %v1044
      %1248 = vmatmul.mubr.f32.gmra.mrb[0].mxu0 %v1043
      %v1249 = vpop.f32.mrb[0].mxu0
      %v1250 = vadd.f32 %v1106, %v1249
      %v1251 = vpop.f32.mrb[0].mxu0
      %1252 = vmatprep.mubr.f32.mxu0 %v1046
      %1253 = vmatmul.mubr.f32.gmra.mrb[0].mxu0 %v1045
      %v1254 = vpop.f32.mrb[0].mxu0
      %v1255 = vadd.f32 %v1111, %v1254
      %v1256 = vpop.f32.mrb[0].mxu0
      %1257 = vmatprep.mubr.f32.mxu0 %v1048
      %1258 = vmatmul.mubr.f32.gmra.mrb[0].mxu0 %v1047
      %v1259 = vpop.f32.mrb[0].mxu0
      %v1260 = vadd.f32 %v1116, %v1259
      %v1261 = vpop.f32.mrb[0].mxu0
      %1262 = vmatprep.mubr.f32.mxu0 %v1050
      %1263 = vmatmul.mubr.f32.gmra.mrb[0].mxu0 %v1049
      %v1264 = vpop.f32.mrb[0].mxu0
      %v1265 = vadd.f32 %v1121, %v1264
      %v1266 = vpop.f32.mrb[0].mxu0
      %1267 = vmatprep.mubr.f32.mxu0 %v1052
      %1268 = vmatmul.mubr.f32.gmra.mrb[0].mxu0 %v1051
      %v1269 = vpop.f32.mrb[0].mxu0
      %v1270 = vadd.f32 %v1126, %v1269
      %v1271 = vpop.f32.mrb[0].mxu0
      %1272 = vmatprep.mubr.f32.mxu0 %v1054
      %1273 = vmatmul.mubr.f32.gmra.mrb[0].mxu0 %v1053
      %v1274 = vpop.f32.mrb[0].mxu0
      %v1275 = vadd.f32 %v1131, %v1274
      %v1276 = vpop.f32.mrb[0].mxu0
      %1277 = vmatprep.mubr.f32.mxu0 %v1056
      %1278 = vmatmul.mubr.f32.gmra.mrb[0].mxu0 %v1055
      %v1279 = vpop.f32.mrb[0].mxu0
      %v1280 = vadd.f32 %v1136, %v1279
      %v1281 = vpop.f32.mrb[0].mxu0
      %1282 = vmatprep.mubr.f32.mxu0 %v1058
      %1283 = vmatmul.mubr.f32.gmra.mrb[0].mxu0 %v1057
      %v1284 = vpop.f32.mrb[0].mxu0
      %v1285 = vadd.f32 %v1141, %v1284
      %v1286 = vpop.f32.mrb[0].mxu0
      %1287 = vmatprep.mubr.f32.mxu0 %v1060
      %1288 = vmatmul.mubr.f32.gmra.mrb[0].mxu0 %v1059
      %v1289 = vpop.f32.mrb[0].mxu0
      %v1290 = vadd.f32 %v1146, %v1289
      %v1291 = vpop.f32.mrb[0].mxu0
      %1292 = vmatprep.mubr.f32.mxu0 %v1062
      %1293 = vmatmul.mubr.f32.gmra.mrb[0].mxu0 %v1061
      %v1294 = vpop.f32.mrb[0].mxu0
      %v1295 = vadd.f32 %v1151, %v1294
      %v1296 = vpop.f32.mrb[0].mxu0
      %1297 = vmatprep.mubr.f32.mxu0 %v1064
      %1298 = vmatmul.mubr.f32.gmra.mrb[0].mxu0 %v1063
      %v1299 = vpop.f32.mrb[0].mxu0
      %v1300 = vadd.f32 %v1156, %v1299
      %v1301 = vpop.f32.mrb[0].mxu0
      %1302 = vmatprep.mubr.f32.mxu0 %v1066
      %1303 = vmatmul.mubr.f32.gmra.mrb[0].mxu0 %v1065
      %v1304 = vpop.f32.mrb[0].mxu0
      %v1305 = vadd.f32 %v1161, %v1304
      %v1306 = vpop.f32.mrb[0].mxu0
      %1307 = vdwg.mxu0
      %v1308 = vmul.f32 %v1230, 0.5
      %v1309 = vmul.f32 %v1235, 0.5
      %v1310 = vmul.f32 %v1240, 0.5
      %v1311 = vmul.f32 %v1245, 0.5
      %v1312 = vmul.f32 %v1250, 0.5
      %v1313 = vmul.f32 %v1255, 0.5
      %v1314 = vmul.f32 %v1260, 0.5
      %v1315 = vmul.f32 %v1265, 0.5
      %v1316 = vmul.f32 %v1270, 0.5
      %v1317 = vmul.f32 %v1275, 0.5
      %v1318 = vmul.f32 %v1280, 0.5
      %v1319 = vmul.f32 %v1285, 0.5
      %v1320 = vmul.f32 %v1290, 0.5
      %v1321 = vmul.f32 %v1295, 0.5
      %v1322 = vmul.f32 %v1300, 0.5
      %v1323 = vmul.f32 %v1305, 0.5
      %v1324 = vmul.f32 %v1230, 0.70710677
      %v1325 = vmul.f32 %v1235, 0.70710677
      %v1326 = vmul.f32 %v1240, 0.70710677
      %v1327 = vmul.f32 %v1245, 0.70710677
      %v1328 = vmul.f32 %v1250, 0.70710677
      %v1329 = vmul.f32 %v1255, 0.70710677
      %v1330 = vmul.f32 %v1260, 0.70710677
      %v1331 = vmul.f32 %v1265, 0.70710677
      %v1332 = vmul.f32 %v1270, 0.70710677
      %v1333 = vmul.f32 %v1275, 0.70710677
      %v1334 = vmul.f32 %v1280, 0.70710677
      %v1335 = vmul.f32 %v1285, 0.70710677
      %v1336 = vmul.f32 %v1290, 0.70710677
      %v1337 = vmul.f32 %v1295, 0.70710677
      %v1338 = vmul.f32 %v1300, 0.70710677
      %v1339 = vmul.f32 %v1305, 0.70710677
      %v1340 = verf.f32.pop %v1324
      %v1341 = verf.f32.pop %v1325
      %v1342 = verf.f32.pop %v1326
      %v1343 = verf.f32.pop %v1327
      %v1344 = verf.f32.pop %v1328
      %v1345 = verf.f32.pop %v1329
      %v1346 = verf.f32.pop %v1330
      %v1347 = verf.f32.pop %v1331
      %v1348 = verf.f32.pop %v1332
      %v1349 = verf.f32.pop %v1333
      %v1350 = verf.f32.pop %v1334
      %v1351 = verf.f32.pop %v1335
      %v1352 = verf.f32.pop %v1336
      %v1353 = verf.f32.pop %v1337
      %v1354 = verf.f32.pop %v1338
      %v1355 = verf.f32.pop %v1339
      %v1356 = vadd.f32 %v1340, 1.0
      %v1357 = vadd.f32 %v1341, 1.0
      %v1358 = vadd.f32 %v1342, 1.0
      %v1359 = vadd.f32 %v1343, 1.0
      %v1360 = vadd.f32 %v1344, 1.0
      %v1361 = vadd.f32 %v1345, 1.0
      %v1362 = vadd.f32 %v1346, 1.0
      %v1363 = vadd.f32 %v1347, 1.0
      %v1364 = vadd.f32 %v1348, 1.0
      %v1365 = vadd.f32 %v1349, 1.0
      %v1366 = vadd.f32 %v1350, 1.0
      %v1367 = vadd.f32 %v1351, 1.0
      %v1368 = vadd.f32 %v1352, 1.0
      %v1369 = vadd.f32 %v1353, 1.0
      %v1370 = vadd.f32 %v1354, 1.0
      %v1371 = vadd.f32 %v1355, 1.0
      %v1372 = vmul.f32 %v1308, %v1356
      %v1373 = vmul.f32 %v1309, %v1357
      %v1374 = vmul.f32 %v1310, %v1358
      %v1375 = vmul.f32 %v1311, %v1359
      %v1376 = vmul.f32 %v1312, %v1360
      %v1377 = vmul.f32 %v1313, %v1361
      %v1378 = vmul.f32 %v1314, %v1362
      %v1379 = vmul.f32 %v1315, %v1363
      %v1380 = vmul.f32 %v1316, %v1364
      %v1381 = vmul.f32 %v1317, %v1365
      %v1382 = vmul.f32 %v1318, %v1366
      %v1383 = vmul.f32 %v1319, %v1367
      %v1384 = vmul.f32 %v1320, %v1368
      %v1385 = vmul.f32 %v1321, %v1369
      %v1386 = vmul.f32 %v1322, %v1370
      %v1387 = vmul.f32 %v1323, %v1371
      %v1388 = vld [vmem:[%s5] sm:$0xff]
      %v1389 = vld [vmem:[%s5 + $0x8] sm:$0xff]
      %v1390 = vld [vmem:[%s5 + $0x10] sm:$0xff]
      %v1391 = vld [vmem:[%s5 + $0x18] sm:$0xff]
      %v1392 = vld [vmem:[%s5 + $0x20] sm:$0xff]
      %v1393 = vld [vmem:[%s5 + $0x28] sm:$0xff]
      %v1394 = vld [vmem:[%s5 + $0x30] sm:$0xff]
      %v1395 = vld [vmem:[%s5 + $0x38] sm:$0xff]
      %v1396 = vld [vmem:[%s6] sm:$0xff]
      %v1397 = vld [vmem:[%s6 + $0x8] sm:$0xff]
      %v1398 = vld [vmem:[%s6 + $0x10] sm:$0xff]
      %v1399 = vld [vmem:[%s6 + $0x18] sm:$0xff]
      %v1400 = vld [vmem:[%s6 + $0x20] sm:$0xff]
      %v1401 = vld [vmem:[%s6 + $0x28] sm:$0xff]
      %v1402 = vld [vmem:[%s6 + $0x30] sm:$0xff]
      %v1403 = vld [vmem:[%s6 + $0x38] sm:$0xff]
      %1405 = vset.pattern.permute.xlu0 0
      %1406 = vperm.xlu0 %1405, %v1396
      %v1407 = vpop.permute.xlu0 %1406
      %1410 = vset.pattern.permute.xlu0 0
      %1411 = vperm.xlu0 %1410, %v1397
      %v1412 = vpop.permute.xlu0 %1411
      %1415 = vset.pattern.permute.xlu0 0
      %1416 = vperm.xlu0 %1415, %v1398
      %v1417 = vpop.permute.xlu0 %1416
      %1420 = vset.pattern.permute.xlu0 0
      %1421 = vperm.xlu0 %1420, %v1399
      %v1422 = vpop.permute.xlu0 %1421
      %1425 = vset.pattern.permute.xlu0 0
      %1426 = vperm.xlu0 %1425, %v1400
      %v1427 = vpop.permute.xlu0 %1426
      %1430 = vset.pattern.permute.xlu0 0
      %1431 = vperm.xlu0 %1430, %v1401
      %v1432 = vpop.permute.xlu0 %1431
      %1435 = vset.pattern.permute.xlu0 0
      %1436 = vperm.xlu0 %1435, %v1402
      %v1437 = vpop.permute.xlu0 %1436
      %1440 = vset.pattern.permute.xlu0 0
      %1441 = vperm.xlu0 %1440, %v1403
      %v1442 = vpop.permute.xlu0 %1441
      %1444 = vmatprep.subr.mxu0 0.0
      %1445 = vmatpush1.msra.mxu0 %v1372
      %1446 = vmatprep.subr.mxu0 0.0
      %1447 = vmatpush1.msra.mxu0 %v1373
      %1448 = vmatprep.subr.mxu0 0.0
      %1449 = vmatpush1.msra.mxu0 %v1374
      %1450 = vmatprep.subr.mxu0 0.0
      %1451 = vmatpush1.msra.mxu0 %v1375
      %1452 = vmatprep.subr.mxu0 0.0
      %1453 = vmatpush1.msra.mxu0 %v1376
      %1454 = vmatprep.subr.mxu0 0.0
      %1455 = vmatpush1.msra.mxu0 %v1377
      %1456 = vmatprep.subr.mxu0 0.0
      %1457 = vmatpush1.msra.mxu0 %v1378
      %1458 = vmatprep.subr.mxu0 0.0
      %1459 = vmatpush1.msra.mxu0 %v1379
      %1460 = vmatprep.subr.mxu0 0.0
      %1461 = vmatpush1.msra.mxu0 %v1380
      %1462 = vmatprep.subr.mxu0 0.0
      %1463 = vmatpush1.msra.mxu0 %v1381
      %1464 = vmatprep.subr.mxu0 0.0
      %1465 = vmatpush1.msra.mxu0 %v1382
      %1466 = vmatprep.subr.mxu0 0.0
      %1467 = vmatpush1.msra.mxu0 %v1383
      %1468 = vmatprep.subr.mxu0 0.0
      %1469 = vmatpush1.msra.mxu0 %v1384
      %1470 = vmatprep.subr.mxu0 0.0
      %1471 = vmatpush1.msra.mxu0 %v1385
      %1472 = vmatprep.subr.mxu0 0.0
      %1473 = vmatpush1.msra.mxu0 %v1386
      %1474 = vmatprep.subr.mxu0 0.0
      %1475 = vmatpush1.msra.mxu0 %v1387
      %1476 = vmatprep.subr.mxu0 0.0
      %1477 = vmatpush1.msra.mxu0 0.0
      %1478 = vmatprep.subr.mxu0 0.0
      %1479 = vmatpush1.msra.mxu0 0.0
      %1480 = vmatprep.subr.mxu0 0.0
      %1481 = vmatpush1.msra.mxu0 0.0
      %1482 = vmatprep.subr.mxu0 0.0
      %1483 = vmatpush1.msra.mxu0 0.0
      %1484 = vmatprep.subr.mxu0 0.0
      %1485 = vmatpush1.msra.mxu0 0.0
      %1486 = vmatprep.subr.mxu0 0.0
      %1487 = vmatpush1.msra.mxu0 0.0
      %1488 = vmatprep.subr.mxu0 0.0
      %1489 = vmatpush1.msra.mxu0 0.0
      %1490 = vmatprep.subr.mxu0 0.0
      %1491 = vmatpush1.msra.mxu0 0.0
      %1492 = vmatprep.subr.mxu0 0.0
      %1493 = vmatpush1.msra.mxu0 0.0
      %1494 = vmatprep.subr.mxu0 0.0
      %1495 = vmatpush1.msra.mxu0 0.0
      %1496 = vmatprep.subr.mxu0 0.0
      %1497 = vmatpush1.msra.mxu0 0.0
      %1498 = vmatprep.subr.mxu0 0.0
      %1499 = vmatpush1.msra.mxu0 0.0
      %1500 = vmatprep.subr.mxu0 0.0
      %1501 = vmatpush1.msra.mxu0 0.0
      %1502 = vmatprep.subr.mxu0 0.0
      %1503 = vmatpush1.msra.mxu0 0.0
      %1504 = vmatprep.subr.mxu0 0.0
      %1505 = vmatpush1.msra.mxu0 0.0
      %1506 = vmatprep.subr.mxu0 0.0
      %1507 = vmatpush1.msra.mxu0 0.0
      %1508 = vmatprep.mubr.f32.mxu0 0.0
      %1509 = vmatmul.mubr.f32.gmra.mrb[0].mxu0 %v1388
      %v1510 = vpop.f32.mrb[0].mxu0
      %v1511 = vadd.f32 %v1407, %v1510
      %v1512 = vpop.f32.mrb[0].mxu0
      %1513 = vmatprep.mubr.f32.mxu0 0.0
      %1514 = vmatmul.mubr.f32.gmra.mrb[0].mxu0 %v1389
      %v1515 = vpop.f32.mrb[0].mxu0
      %v1516 = vadd.f32 %v1412, %v1515
      %v1517 = vpop.f32.mrb[0].mxu0
      %1518 = vmatprep.mubr.f32.mxu0 0.0
      %1519 = vmatmul.mubr.f32.gmra.mrb[0].mxu0 %v1390
      %v1520 = vpop.f32.mrb[0].mxu0
      %v1521 = vadd.f32 %v1417, %v1520
      %v1522 = vpop.f32.mrb[0].mxu0
      %1523 = vmatprep.mubr.f32.mxu0 0.0
      %1524 = vmatmul.mubr.f32.gmra.mrb[0].mxu0 %v1391
      %v1525 = vpop.f32.mrb[0].mxu0
      %v1526 = vadd.f32 %v1422, %v1525
      %v1527 = vpop.f32.mrb[0].mxu0
      %1528 = vmatprep.mubr.f32.mxu0 0.0
      %1529 = vmatmul.mubr.f32.gmra.mrb[0].mxu0 %v1392
      %v1530 = vpop.f32.mrb[0].mxu0
      %v1531 = vadd.f32 %v1427, %v1530
      %v1532 = vpop.f32.mrb[0].mxu0
      %1533 = vmatprep.mubr.f32.mxu0 0.0
      %1534 = vmatmul.mubr.f32.gmra.mrb[0].mxu0 %v1393
      %v1535 = vpop.f32.mrb[0].mxu0
      %v1536 = vadd.f32 %v1432, %v1535
      %v1537 = vpop.f32.mrb[0].mxu0
      %1538 = vmatprep.mubr.f32.mxu0 0.0
      %1539 = vmatmul.mubr.f32.gmra.mrb[0].mxu0 %v1394
      %v1540 = vpop.f32.mrb[0].mxu0
      %v1541 = vadd.f32 %v1437, %v1540
      %v1542 = vpop.f32.mrb[0].mxu0
      %1543 = vmatprep.mubr.f32.mxu0 0.0
      %1544 = vmatmul.mubr.f32.gmra.mrb[0].mxu0 %v1395
      %v1545 = vpop.f32.mrb[0].mxu0
      %v1546 = vadd.f32 %v1442, %v1545
      %v1547 = vpop.f32.mrb[0].mxu0
      %1548 = vdwg.mxu0
      %v1549 = vmul.f32 %v1511, 0.5
      %v1550 = vmul.f32 %v1516, 0.5
      %v1551 = vmul.f32 %v1521, 0.5
      %v1552 = vmul.f32 %v1526, 0.5
      %v1553 = vmul.f32 %v1531, 0.5
      %v1554 = vmul.f32 %v1536, 0.5
      %v1555 = vmul.f32 %v1541, 0.5
      %v1556 = vmul.f32 %v1546, 0.5
      %v1557 = vmul.f32 %v1511, 0.70710677
      %v1558 = vmul.f32 %v1516, 0.70710677
      %v1559 = vmul.f32 %v1521, 0.70710677
      %v1560 = vmul.f32 %v1526, 0.70710677
      %v1561 = vmul.f32 %v1531, 0.70710677
      %v1562 = vmul.f32 %v1536, 0.70710677
      %v1563 = vmul.f32 %v1541, 0.70710677
      %v1564 = vmul.f32 %v1546, 0.70710677
      %v1565 = verf.f32.pop %v1557
      %v1566 = verf.f32.pop %v1558
      %v1567 = verf.f32.pop %v1559
      %v1568 = verf.f32.pop %v1560
      %v1569 = verf.f32.pop %v1561
      %v1570 = verf.f32.pop %v1562
      %v1571 = verf.f32.pop %v1563
      %v1572 = verf.f32.pop %v1564
      %v1573 = vadd.f32 %v1565, 1.0
      %v1574 = vadd.f32 %v1566, 1.0
      %v1575 = vadd.f32 %v1567, 1.0
      %v1576 = vadd.f32 %v1568, 1.0
      %v1577 = vadd.f32 %v1569, 1.0
      %v1578 = vadd.f32 %v1570, 1.0
      %v1579 = vadd.f32 %v1571, 1.0
      %v1580 = vadd.f32 %v1572, 1.0
      %v1581 = vmul.f32 %v1549, %v1573
      %v1582 = vmul.f32 %v1550, %v1574
      %v1583 = vmul.f32 %v1551, %v1575
      %v1584 = vmul.f32 %v1552, %v1576
      %v1585 = vmul.f32 %v1553, %v1577
      %v1586 = vmul.f32 %v1554, %v1578
      %v1587 = vmul.f32 %v1555, %v1579
      %v1588 = vmul.f32 %v1556, %v1580
      %v1589 = vld [vmem:[%s7] sm:$0x7]
      %v1590 = vld [vmem:[%s8] sm:$0x7]
      %1592 = vset.pattern.permute.xlu0 0
      %1593 = vperm.xlu0 %1592, %v1590
      %v1594 = vpop.permute.xlu0 %1593
      %vm1596 = vcmask 523264
      %v1598 = vsel %vm1596, %v1589, 0
      %1600 = vmatprep.subr.mxu0 0.0
      %1601 = vmatpush1.msra.mxu0 %v1581
      %1602 = vmatprep.subr.mxu0 0.0
      %1603 = vmatpush1.msra.mxu0 %v1582
      %1604 = vmatprep.subr.mxu0 0.0
      %1605 = vmatpush1.msra.mxu0 %v1583
      %1606 = vmatprep.subr.mxu0 0.0
      %1607 = vmatpush1.msra.mxu0 %v1584
      %1608 = vmatprep.subr.mxu0 0.0
      %1609 = vmatpush1.msra.mxu0 %v1585
      %1610 = vmatprep.subr.mxu0 0.0
      %1611 = vmatpush1.msra.mxu0 %v1586
      %1612 = vmatprep.subr.mxu0 0.0
      %1613 = vmatpush1.msra.mxu0 %v1587
      %1614 = vmatprep.subr.mxu0 0.0
      %1615 = vmatpush1.msra.mxu0 %v1588
      %1616 = vmatprep.subr.mxu0 0.0
      %1617 = vmatpush1.msra.mxu0 0.0
      %1618 = vmatprep.subr.mxu0 0.0
      %1619 = vmatpush1.msra.mxu0 0.0
      %1620 = vmatprep.subr.mxu0 0.0
      %1621 = vmatpush1.msra.mxu0 0.0
      %1622 = vmatprep.subr.mxu0 0.0
      %1623 = vmatpush1.msra.mxu0 0.0
      %1624 = vmatprep.subr.mxu0 0.0
      %1625 = vmatpush1.msra.mxu0 0.0
      %1626 = vmatprep.subr.mxu0 0.0
      %1627 = vmatpush1.msra.mxu0 0.0
      %1628 = vmatprep.subr.mxu0 0.0
      %1629 = vmatpush1.msra.mxu0 0.0
      %1630 = vmatprep.subr.mxu0 0.0
      %1631 = vmatpush1.msra.mxu0 0.0
      %1632 = vmatprep.subr.mxu0 0.0
      %1633 = vmatpush1.msra.mxu0 0.0
      %1634 = vmatprep.subr.mxu0 0.0
      %1635 = vmatpush1.msra.mxu0 0.0
      %1636 = vmatprep.subr.mxu0 0.0
      %1637 = vmatpush1.msra.mxu0 0.0
      %1638 = vmatprep.subr.mxu0 0.0
      %1639 = vmatpush1.msra.mxu0 0.0
      %1640 = vmatprep.subr.mxu0 0.0
      %1641 = vmatpush1.msra.mxu0 0.0
      %1642 = vmatprep.subr.mxu0 0.0
      %1643 = vmatpush1.msra.mxu0 0.0
      %1644 = vmatprep.subr.mxu0 0.0
      %1645 = vmatpush1.msra.mxu0 0.0
      %1646 = vmatprep.subr.mxu0 0.0
      %1647 = vmatpush1.msra.mxu0 0.0
      %1648 = vmatprep.subr.mxu0 0.0
      %1649 = vmatpush1.msra.mxu0 0.0
      %1650 = vmatprep.subr.mxu0 0.0
      %1651 = vmatpush1.msra.mxu0 0.0
      %1652 = vmatprep.subr.mxu0 0.0
      %1653 = vmatpush1.msra.mxu0 0.0
      %1654 = vmatprep.subr.mxu0 0.0
      %1655 = vmatpush1.msra.mxu0 0.0
      %1656 = vmatprep.subr.mxu0 0.0
      %1657 = vmatpush1.msra.mxu0 0.0
      %1658 = vmatprep.subr.mxu0 0.0
      %1659 = vmatpush1.msra.mxu0 0.0
      %1660 = vmatprep.subr.mxu0 0.0
      %1661 = vmatpush1.msra.mxu0 0.0
      %1662 = vmatprep.subr.mxu0 0.0
      %1663 = vmatpush1.msra.mxu0 0.0
      %1664 = vmatprep.mubr.f32.mxu0 0.0
      %1665 = vmatmul.mubr.f32.gmra.mrb[0].mxu0 %v1598
      %v1666 = vpop.f32.mrb[0].mxu0
      %v1667 = vadd.f32 %v1594, %v1666
      %v1668 = vpop.f32.mrb[0].mxu0
      %1669 = vdwg.mxu0
      %v1670 = vmul.f32 %v1667, 0.5
      %v1671 = vmul.f32 %v1667, 0.70710677
      %v1672 = verf.f32.pop %v1671
      %v1673 = vadd.f32 %v1672, 1.0
      %v1674 = vmul.f32 %v1670, %v1673
      %1675 = vst [vmem:[%s361] sm:$0x7] %v1674
      %p1676 = scmp.lt.s32.totalorder %s24, 1
      %s1677 = scalar_select %p1676, %s24, 1
      %p1678 = scmp.lt.s32.totalorder %s25, 0
      %s1679 = scalar_select %p1678, %s25, 0
      %s1680 = sadd.s32 %s1679, %s1677
      %s1681 = smul.addr %s1680, 4
      %s1682 = scalar_lea.vmem %s9, %s1681
      // Predicated region
      $region57: #{decoder_forward.1} parent=55 // pred_check
        %p1683 = pneg %p248
      $region58: #{decoder_forward.1} parent=55 // pred_check_branch
        %1685 = sbr.rel (%p1683) target = $region60
      $region59: #{decoder_forward.1} parent=55 // pred_region
        _
      $region60: #{decoder_forward.1} parent=55 // pred_fallthru
        _
    $region56: #{decoder_forward.1} parent=5 // pred_fallthru
      _
    %p1686 = scmp.le.s32.totalorder 2, %s15
    // Predicated region
    $region61: #{decoder_forward.1} parent=5 // pred_check
      %p1687 = pneg %p1686
    $region62: #{decoder_forward.1} parent=5 // pred_check_branch
      %1689 = sbr.rel (%p1687) target = $region64
    $region63: #{decoder_forward.1} parent=5 // pred_region
      %s1690 = ssub.s32 %s15, 2
      // Predicated region
      $region65: #{decoder_forward.1} parent=63 // pred_check
        %p1691 = pneg %p254
      $region66: #{decoder_forward.1} parent=63 // pred_check_branch
        %1693 = sbr.rel (%p1691) target = $region68
      $region67: #{decoder_forward.1} parent=63 // pred_region
        %p1694 = scmp.lt.s32.totalorder %s26, 1
        %s1695 = scalar_select %p1694, %s26, 1
        %p1696 = scmp.lt.s32.totalorder %s27, 0
        %s1697 = scalar_select %p1696, %s27, 0
        %s1698 = sadd.s32 %s1697, %s1695
        %s1699 = smul.addr %s1698, 4
        %s1700 = scalar_lea.vmem %s9, %s1699
      $region68: #{decoder_forward.1} parent=63 // pred_fallthru
        _
    $region64: #{decoder_forward.1} parent=5 // pred_fallthru
      _
  $region6: #{decoder_forward.1} parent=0 // loop_footer
    %s19 = sadd.s32 1, %s15
  $region7: #{decoder_forward.1} parent=0 // loop_footer_branch
    %14 = sbr.rel target = $region3
  $region8: #{decoder_forward.1} parent=0 // loop_exit
    _

</llo_original>
